<compile_context>
chip_gen: v5e
topology: v5e:2x2
jax: 0.10.0
libtpu: 0.0.40
codegen_flags: <defaults>
</compile_context>

<pallas_src>
import math

import jax
import jax.numpy as jnp
from jax.experimental import pallas as pl
from jax.experimental.pallas import tpu as pltpu

LN_EPS = 1e-5


def _make_gcn_layer_kernel(add_residual):
    """Fused GCN layer: out = relu(LN(A_hat @ X @ W + b)) [+ x_res]."""

    def kernel(*refs):
        if add_residual:
            (a_ref, xin_ref, xres_ref, w_ref, b_ref, g_ref, be_ref,
             o_ref, acc_ref) = refs
        else:
            (a_ref, xin_ref, w_ref, b_ref, g_ref, be_ref,
             o_ref, acc_ref) = refs

        k = pl.program_id(1)

        @pl.when(k == 0)
        def _():
            acc_ref[...] = jnp.zeros_like(acc_ref)

        # ---- Aggregation: acc += A[i, k] @ X[k]  (bf16 MXU, f32 accumulate) ----
        a_blk = a_ref[...].astype(jnp.bfloat16)
        x_blk = xin_ref[...].astype(jnp.bfloat16)
        acc_ref[...] += jnp.dot(a_blk, x_blk,
                                preferred_element_type=jnp.float32)

        # ---- Epilogue on last contraction step: transform + LN + ReLU (+res) ----
        @pl.when(k == pl.num_programs(1) - 1)
        def _():
            h = jnp.dot(acc_ref[...], w_ref[...],
                        preferred_element_type=jnp.float32) + b_ref[...]
            mu = jnp.mean(h, axis=-1, keepdims=True)
            var = jnp.mean((h - mu) * (h - mu), axis=-1, keepdims=True)
            h = (h - mu) * jax.lax.rsqrt(var + LN_EPS) * g_ref[...] + be_ref[...]
            # TODO(synk): training-mode dropout (pltpu.prng_seed / prng_random_bits
            # masking) not implemented; eval-mode identity matches the reference.
            h = jnp.maximum(h, 0.0)
            if add_residual:
                h = h + xres_ref[...]
            o_ref[...] = h.astype(o_ref.dtype)

    return kernel


def gcn_layer(a_hat, x_in, w, b, g, be, *, x_res=None,
              out_dtype=jnp.float32, tm=128, tk=128):
    """One GCN conv + LayerNorm + ReLU (+ optional residual), tiled over A_hat."""
    n = a_hat.shape[0]
    f_in = x_in.shape[1]
    h_out = w.shape[1]
    assert n % tm == 0 and n % tk == 0

    in_specs = [
        pl.BlockSpec((tm, tk), lambda i, k: (i, k)),       # A_hat tile (streamed)
        pl.BlockSpec((tk, f_in), lambda i, k: (k, 0)),     # X rows for this k tile
    ]
    operands = [a_hat, x_in]
    if x_res is not None:
        in_specs.append(pl.BlockSpec((tm, h_out), lambda i, k: (i, 0)))  # residual
        operands.append(x_res)
    in_specs += [
        pl.BlockSpec((f_in, h_out), lambda i, k: (0, 0)),  # W (VMEM-resident)
        pl.BlockSpec((1, h_out), lambda i, k: (0, 0)),     # bias
        pl.BlockSpec((1, h_out), lambda i, k: (0, 0)),     # LN gamma
        pl.BlockSpec((1, h_out), lambda i, k: (0, 0)),     # LN beta
    ]
    operands += [w, b, g, be]

    out_itemsize = jnp.dtype(out_dtype).itemsize
    cost = pl.CostEstimate(
        flops=2 * n * n * f_in + 2 * n * f_in * h_out,
        transcendentals=n,                                  # one rsqrt per row
        bytes_accessed=(n * n * a_hat.dtype.itemsize
                        + n * f_in * x_in.dtype.itemsize
                        + (f_in + 3) * h_out * 4
                        + n * h_out * out_itemsize),
    )

    return pl.pallas_call(
        _make_gcn_layer_kernel(x_res is not None),
        out_shape=jax.ShapeDtypeStruct((n, h_out), out_dtype),
        grid_spec=pltpu.PrefetchScalarGridSpec(
            num_scalar_prefetch=0,
            grid=(n // tm, n // tk),
            in_specs=in_specs,
            out_specs=pl.BlockSpec((tm, h_out), lambda i, k: (i, 0)),
            scratch_shapes=[pltpu.VMEM((tm, f_in), jnp.float32)],
        ),
        compiler_params=pltpu.CompilerParams(
            dimension_semantics=("parallel", "arbitrary"),
            vmem_limit_bytes=64 * 1024 * 1024,
        ),
        cost_estimate=cost,
    )(*operands)


def _pad2d(a, rows, cols):
    pr = rows - a.shape[0]
    pc = cols - a.shape[1]
    if pr or pc:
        a = jnp.pad(a, ((0, pr), (0, pc)))
    return a


def residual_block(a_hat, x, params, *, tm=128, tk=128):
    """Forward pass of the PyTorch ResidualBlock (eval mode)."""
    n, f = x.shape
    h = params["w1"].shape[1]
    assert f == h, "residual add requires in_features == hidden_features"

    tile = math.lcm(tm, tk)
    n_pad = -(-n // tile) * tile
    # Padded A rows/cols and x rows are zero, so they contribute nothing to the
    # contraction; padded output rows are sliced off before returning.
    a_bf16 = _pad2d(a_hat, n_pad, n_pad).astype(jnp.bfloat16)
    x_f32 = _pad2d(x, n_pad, f)

    # TODO(synk): if the hidden width is not a multiple of 128, additionally
    # pad W/b/gamma/beta and mask the LayerNorm statistics to the real width.

    h1 = gcn_layer(a_bf16, x_f32.astype(jnp.bfloat16),
                   params["w1"], params["b1"], params["g1"], params["be1"],
                   out_dtype=jnp.bfloat16, tm=tm, tk=tk)
    out = gcn_layer(a_bf16, h1,
                    params["w2"], params["b2"], params["g2"], params["be2"],
                    x_res=x_f32, out_dtype=jnp.float32, tm=tm, tk=tk)
    return out[:n]


def gcn_normalized_adjacency(edge_index, edge_weight, num_nodes):
    """Dense D^{-1/2}(A+I)D^{-1/2}: A_hat[dst, src] = norm weight (glue, plain JAX)."""
    src, dst = edge_index[0], edge_index[1]
    loop = jnp.arange(num_nodes, dtype=src.dtype)
    src = jnp.concatenate([src, loop])
    dst = jnp.concatenate([dst, loop])
    ew = jnp.concatenate([edge_weight,
                          jnp.ones((num_nodes,), dtype=jnp.float32)])
    deg = jnp.zeros((num_nodes,), jnp.float32).at[dst].add(ew)
    dinv = jnp.where(deg > 0, 1.0 / jnp.sqrt(deg), 0.0)
    norm = dinv[src] * ew * dinv[dst]
    a_hat = jnp.zeros((num_nodes, num_nodes), jnp.float32).at[dst, src].add(norm)
    return a_hat


def init_params(key, in_features, hidden_features):
    k1, k2 = jax.random.split(key)
    scale1 = 1.0 / jnp.sqrt(in_features)
    scale2 = 1.0 / jnp.sqrt(hidden_features)
    return {
        "w1": (jax.random.normal(k1, (in_features, hidden_features), jnp.float32)
               * scale1),
        "b1": jnp.zeros((1, hidden_features), jnp.float32),
        "g1": jnp.ones((1, hidden_features), jnp.float32),
        "be1": jnp.zeros((1, hidden_features), jnp.float32),
        "w2": (jax.random.normal(k2, (hidden_features, hidden_features), jnp.float32)
               * scale2),
        "b2": jnp.zeros((1, hidden_features), jnp.float32),
        "g2": jnp.ones((1, hidden_features), jnp.float32),
        "be2": jnp.zeros((1, hidden_features), jnp.float32),
    }


def ref_residual_block(a_hat, x, p):
    """Pure-JAX reference with the same bf16-on-MXU / f32-elsewhere policy."""
    a_bf = a_hat.astype(jnp.bfloat16)

    def layer(xin, w, b, g, be):
        ax = jnp.dot(a_bf, xin.astype(jnp.bfloat16),
                     preferred_element_type=jnp.float32)
        h = jnp.dot(ax, w, preferred_element_type=jnp.float32) + b
        mu = h.mean(-1, keepdims=True)
        var = ((h - mu) ** 2).mean(-1, keepdims=True)
        h = (h - mu) * jax.lax.rsqrt(var + LN_EPS) * g + be
        return jnp.maximum(h, 0.0)

    h1 = layer(x, p["w1"], p["b1"], p["g1"], p["be1"]).astype(jnp.bfloat16)
    h2 = layer(h1, p["w2"], p["b2"], p["g2"], p["be2"])
    return h2 + x


if __name__ == "__main__":
    key = jax.random.PRNGKey(0)
    kx, kp = jax.random.split(key)

    num_nodes = 256
    in_features = hidden_features = 128   # lane-dense; residual needs in == hidden

    # Node features [N, F]
    x = jax.random.normal(kx, (num_nodes, in_features), jnp.float32)

    # Deterministic graph: bidirectional ring + skip-4 chords, unit weights.
    idx = jnp.arange(num_nodes, dtype=jnp.int32)
    nbr1 = (idx + 1) % num_nodes
    nbr4 = (idx + 4) % num_nodes
    src = jnp.concatenate([idx, nbr1, idx, nbr4])
    dst = jnp.concatenate([nbr1, idx, nbr4, idx])
    edge_index = jnp.stack([src, dst], axis=0)
    edge_weight = jnp.ones((edge_index.shape[1],), jnp.float32)

    a_hat = gcn_normalized_adjacency(edge_index, edge_weight, num_nodes)
    params = init_params(kp, in_features, hidden_features)

    fwd = jax.jit(lambda a, xx: residual_block(a, xx, params))
    out = jax.block_until_ready(fwd(a_hat, x))

    ref = ref_residual_block(a_hat, x, params)
    err = float(jnp.max(jnp.abs(out - ref)))
    assert out.shape == (num_nodes, in_features)
    assert bool(jnp.isfinite(out).all())
    assert err < 5e-2, f"max abs error too large: {err}"
    print("KERNEL_OK")
</pallas_src>

<mosaic_0001>
module attributes {stable_mosaic.version = 11 : i64} {
  func.func @kernel(%arg0: i32, %arg1: i32, %arg2: memref<128x128xbf16, #tpu.memory_space<vmem>>, %arg3: memref<128x128xbf16, #tpu.memory_space<vmem>>, %arg4: memref<128x128xf32, #tpu.memory_space<vmem>>, %arg5: memref<1x128xf32, #tpu.memory_space<vmem>>, %arg6: memref<1x128xf32, #tpu.memory_space<vmem>>, %arg7: memref<1x128xf32, #tpu.memory_space<vmem>>, %arg8: memref<128x128xbf16, #tpu.memory_space<vmem>>, %arg9: memref<128x128xf32, #tpu.memory_space<vmem>>) attributes {dimension_semantics = [#tpu.dimension_semantics<parallel>, #tpu.dimension_semantics<arbitrary>], iteration_bounds = array<i64: 2, 2>, scalar_prefetch = 0 : i64, scratch_operands = 1 : i64, tpu.core_type = #tpu.core_type<tc>, window_params = [{transform_indices = @transform_0, window_bounds = array<i64: 128, 128>}, {transform_indices = @transform_1, window_bounds = array<i64: 128, 128>}, {pipeline_mode = #tpu.pipeline_mode<synchronous>, transform_indices = @transform_2, window_bounds = array<i64: 128, 128>}, {pipeline_mode = #tpu.pipeline_mode<synchronous>, transform_indices = @transform_3, window_bounds = array<i64: 1, 128>}, {pipeline_mode = #tpu.pipeline_mode<synchronous>, transform_indices = @transform_4, window_bounds = array<i64: 1, 128>}, {pipeline_mode = #tpu.pipeline_mode<synchronous>, transform_indices = @transform_5, window_bounds = array<i64: 1, 128>}, {transform_indices = @transform_6, window_bounds = array<i64: 128, 128>}]} {
    %c0_i32 = arith.constant 0 : i32
    %0 = arith.cmpi eq, %arg1, %c0_i32 : i32
    %1 = arith.extui %0 : i1 to i32
    %c0_i32_0 = arith.constant 0 : i32
    %2 = arith.cmpi ne, %1, %c0_i32_0 : i32
    scf.if %2 {
      %cst_9 = arith.constant 0.000000e+00 : f32
      %12 = vector.broadcast %cst_9 : f32 to vector<128x128xf32>
      %c0_10 = arith.constant 0 : index
      %c0_11 = arith.constant 0 : index
      %13 = vector.load %arg9[%c0_10, %c0_11] : memref<128x128xf32, #tpu.memory_space<vmem>>, vector<128x128xf32>
      tpu.vector_store %arg9[%c0_10, %c0_11], %12 {strides = array<i32>} : memref<128x128xf32, #tpu.memory_space<vmem>>, vector<128x128xf32>,
    } else {
    }
    %c0 = arith.constant 0 : index
    %c0_1 = arith.constant 0 : index
    %3 = vector.load %arg2[%c0, %c0_1] : memref<128x128xbf16, #tpu.memory_space<vmem>>, vector<128x128xbf16>
    %c0_2 = arith.constant 0 : index
    %c0_3 = arith.constant 0 : index
    %4 = vector.load %arg3[%c0_2, %c0_3] : memref<128x128xbf16, #tpu.memory_space<vmem>>, vector<128x128xbf16>
    %c0_4 = arith.constant 0 : index
    %c0_5 = arith.constant 0 : index
    %5 = vector.load %arg9[%c0_4, %c0_5] : memref<128x128xf32, #tpu.memory_space<vmem>>, vector<128x128xf32>
    %cst = arith.constant dense<0.000000e+00> : vector<128x128xf32>
    %6 = tpu.matmul %3, %4, %cst {dimension_numbers = #tpu.dot_dimension_numbers<[1], [0], [0], [1], [0, 0, 1, 1], [], []>} : vector<128x128xbf16>, vector<128x128xbf16>, vector<128x128xf32> -> vector<128x128xf32>
    %7 = arith.addf %5, %6 : vector<128x128xf32>
    %c0_6 = arith.constant 0 : index
    %c0_7 = arith.constant 0 : index
    %8 = vector.load %arg9[%c0_6, %c0_7] : memref<128x128xf32, #tpu.memory_space<vmem>>, vector<128x128xf32>
    tpu.vector_store %arg9[%c0_6, %c0_7], %7 {strides = array<i32>} : memref<128x128xf32, #tpu.memory_space<vmem>>, vector<128x128xf32>,
    %c1_i32 = arith.constant 1 : i32
    %9 = arith.cmpi eq, %arg1, %c1_i32 : i32
    %10 = arith.extui %9 : i1 to i32
    %c0_i32_8 = arith.constant 0 : i32
    %11 = arith.cmpi ne, %10, %c0_i32_8 : i32
    scf.if %11 {
      %c0_9 = arith.constant 0 : index
      %c0_10 = arith.constant 0 : index
      %12 = vector.load %arg9[%c0_9, %c0_10] : memref<128x128xf32, #tpu.memory_space<vmem>>, vector<128x128xf32>
      %c0_11 = arith.constant 0 : index
      %c0_12 = arith.constant 0 : index
      %13 = vector.load %arg4[%c0_11, %c0_12] : memref<128x128xf32, #tpu.memory_space<vmem>>, vector<128x128xf32>
      %cst_13 = arith.constant dense<0.000000e+00> : vector<128x128xf32>
      %14 = tpu.matmul %12, %13, %cst_13 {dimension_numbers = #tpu.dot_dimension_numbers<[1], [0], [0], [1], [0, 0, 1, 1], [], []>} : vector<128x128xf32>, vector<128x128xf32>, vector<128x128xf32> -> vector<128x128xf32>
      %c0_14 = arith.constant 0 : index
      %c0_15 = arith.constant 0 : index
      %15 = vector.load %arg5[%c0_14, %c0_15] : memref<1x128xf32, #tpu.memory_space<vmem>>, vector<1x128xf32>
      %16 = vector.broadcast %15 : vector<1x128xf32> to vector<128x128xf32>
      %17 = arith.addf %14, %16 : vector<128x128xf32>
      %cst_16 = arith.constant dense<0.000000e+00> : vector<128xf32>
      %18 = vector.multi_reduction <add>, %17, %cst_16 [1] : vector<128x128xf32> to vector<128xf32>
      %19 = vector.shape_cast %18 : vector<128xf32> to vector<128x1xf32>
      %cst_17 = arith.constant 1.280000e+02 : f32
      %20 = vector.broadcast %cst_17 : f32 to vector<128x1xf32>
      %21 = arith.divf %19, %20 : vector<128x1xf32>
      %22 = vector.broadcast %21 : vector<128x1xf32> to vector<128x128xf32>
      %23 = arith.subf %17, %22 : vector<128x128xf32>
      %24 = vector.broadcast %21 : vector<128x1xf32> to vector<128x128xf32>
      %25 = arith.subf %17, %24 : vector<128x128xf32>
      %26 = arith.mulf %23, %25 : vector<128x128xf32>
      %cst_18 = arith.constant dense<0.000000e+00> : vector<128xf32>
      %27 = vector.multi_reduction <add>, %26, %cst_18 [1] : vector<128x128xf32> to vector<128xf32>
      %28 = vector.shape_cast %27 : vector<128xf32> to vector<128x1xf32>
      %cst_19 = arith.constant 1.280000e+02 : f32
      %29 = vector.broadcast %cst_19 : f32 to vector<128x1xf32>
      %30 = arith.divf %28, %29 : vector<128x1xf32>
      %31 = vector.broadcast %21 : vector<128x1xf32> to vector<128x128xf32>
      %32 = arith.subf %17, %31 : vector<128x128xf32>
      %cst_20 = arith.constant 9.99999974E-6 : f32
      %33 = vector.broadcast %cst_20 : f32 to vector<128x1xf32>
      %34 = arith.addf %30, %33 : vector<128x1xf32>
      %35 = math.rsqrt %34 : vector<128x1xf32>
      %36 = vector.broadcast %35 : vector<128x1xf32> to vector<128x128xf32>
      %37 = arith.mulf %32, %36 : vector<128x128xf32>
      %c0_21 = arith.constant 0 : index
      %c0_22 = arith.constant 0 : index
      %38 = vector.load %arg6[%c0_21, %c0_22] : memref<1x128xf32, #tpu.memory_space<vmem>>, vector<1x128xf32>
      %39 = vector.broadcast %38 : vector<1x128xf32> to vector<128x128xf32>
      %40 = arith.mulf %37, %39 : vector<128x128xf32>
      %c0_23 = arith.constant 0 : index
      %c0_24 = arith.constant 0 : index
      %41 = vector.load %arg7[%c0_23, %c0_24] : memref<1x128xf32, #tpu.memory_space<vmem>>, vector<1x128xf32>
      %42 = vector.broadcast %41 : vector<1x128xf32> to vector<128x128xf32>
      %43 = arith.addf %40, %42 : vector<128x128xf32>
      %cst_25 = arith.constant 0.000000e+00 : f32
      %44 = vector.broadcast %cst_25 : f32 to vector<128x128xf32>
      %45 = arith.maximumf %43, %44 : vector<128x128xf32>
      %46 = arith.truncf %45 : vector<128x128xf32> to vector<128x128xbf16>
      %c0_26 = arith.constant 0 : index
      %c0_27 = arith.constant 0 : index
      %47 = vector.load %arg8[%c0_26, %c0_27] : memref<128x128xbf16, #tpu.memory_space<vmem>>, vector<128x128xbf16>
      tpu.vector_store %arg8[%c0_26, %c0_27], %46 {strides = array<i32>} : memref<128x128xbf16, #tpu.memory_space<vmem>>, vector<128x128xbf16>,
    } else {
    }
    return
  }
  func.func @transform_0(%arg0: i32, %arg1: i32) -> (i32, i32) {
    %c0_i32 = arith.constant 0 : i32
    return %arg0, %arg1 : i32, i32
  }
  func.func @transform_1(%arg0: i32, %arg1: i32) -> (i32, i32) {
    %c0_i32 = arith.constant 0 : i32
    %c0_i32_0 = arith.constant 0 : i32
    return %arg1, %c0_i32 : i32, i32
  }
  func.func @transform_2(%arg0: i32, %arg1: i32) -> (i32, i32) {
    %c0_i32 = arith.constant 0 : i32
    %c0_i32_0 = arith.constant 0 : i32
    %c0_i32_1 = arith.constant 0 : i32
    return %c0_i32, %c0_i32_0 : i32, i32
  }
  func.func @transform_3(%arg0: i32, %arg1: i32) -> (i32, i32) {
    %c0_i32 = arith.constant 0 : i32
    %c0_i32_0 = arith.constant 0 : i32
    %c0_i32_1 = arith.constant 0 : i32
    return %c0_i32, %c0_i32_0 : i32, i32
  }
  func.func @transform_4(%arg0: i32, %arg1: i32) -> (i32, i32) {
    %c0_i32 = arith.constant 0 : i32
    %c0_i32_0 = arith.constant 0 : i32
    %c0_i32_1 = arith.constant 0 : i32
    return %c0_i32, %c0_i32_0 : i32, i32
  }
  func.func @transform_5(%arg0: i32, %arg1: i32) -> (i32, i32) {
    %c0_i32 = arith.constant 0 : i32
    %c0_i32_0 = arith.constant 0 : i32
    %c0_i32_1 = arith.constant 0 : i32
    return %c0_i32, %c0_i32_0 : i32, i32
  }
  func.func @transform_6(%arg0: i32, %arg1: i32) -> (i32, i32) {
    %c0_i32 = arith.constant 0 : i32
    %c0_i32_0 = arith.constant 0 : i32
    return %arg0, %c0_i32 : i32, i32
  }
}

module attributes {stable_mosaic.version = 11 : i64} {
  func.func @kernel(%arg0: i32, %arg1: i32, %arg2: memref<128x128xbf16, #tpu.memory_space<vmem>>, %arg3: memref<128x128xbf16, #tpu.memory_space<vmem>>, %arg4: memref<128x128xf32, #tpu.memory_space<vmem>>, %arg5: memref<128x128xf32, #tpu.memory_space<vmem>>, %arg6: memref<1x128xf32, #tpu.memory_space<vmem>>, %arg7: memref<1x128xf32, #tpu.memory_space<vmem>>, %arg8: memref<1x128xf32, #tpu.memory_space<vmem>>, %arg9: memref<128x128xf32, #tpu.memory_space<vmem>>, %arg10: memref<128x128xf32, #tpu.memory_space<vmem>>) attributes {dimension_semantics = [#tpu.dimension_semantics<parallel>, #tpu.dimension_semantics<arbitrary>], iteration_bounds = array<i64: 2, 2>, scalar_prefetch = 0 : i64, scratch_operands = 1 : i64, tpu.core_type = #tpu.core_type<tc>, window_params = [{transform_indices = @transform_0, window_bounds = array<i64: 128, 128>}, {transform_indices = @transform_1, window_bounds = array<i64: 128, 128>}, {transform_indices = @transform_2, window_bounds = array<i64: 128, 128>}, {pipeline_mode = #tpu.pipeline_mode<synchronous>, transform_indices = @transform_3, window_bounds = array<i64: 128, 128>}, {pipeline_mode = #tpu.pipeline_mode<synchronous>, transform_indices = @transform_4, window_bounds = array<i64: 1, 128>}, {pipeline_mode = #tpu.pipeline_mode<synchronous>, transform_indices = @transform_5, window_bounds = array<i64: 1, 128>}, {pipeline_mode = #tpu.pipeline_mode<synchronous>, transform_indices = @transform_6, window_bounds = array<i64: 1, 128>}, {transform_indices = @transform_7, window_bounds = array<i64: 128, 128>}]} {
    %c0_i32 = arith.constant 0 : i32
    %0 = arith.cmpi eq, %arg1, %c0_i32 : i32
    %1 = arith.extui %0 : i1 to i32
    %c0_i32_0 = arith.constant 0 : i32
    %2 = arith.cmpi ne, %1, %c0_i32_0 : i32
    scf.if %2 {
      %cst_9 = arith.constant 0.000000e+00 : f32
      %12 = vector.broadcast %cst_9 : f32 to vector<128x128xf32>
      %c0_10 = arith.constant 0 : index
      %c0_11 = arith.constant 0 : index
      %13 = vector.load %arg10[%c0_10, %c0_11] : memref<128x128xf32, #tpu.memory_space<vmem>>, vector<128x128xf32>
      tpu.vector_store %arg10[%c0_10, %c0_11], %12 {strides = array<i32>} : memref<128x128xf32, #tpu.memory_space<vmem>>, vector<128x128xf32>,
    } else {
    }
    %c0 = arith.constant 0 : index
    %c0_1 = arith.constant 0 : index
    %3 = vector.load %arg2[%c0, %c0_1] : memref<128x128xbf16, #tpu.memory_space<vmem>>, vector<128x128xbf16>
    %c0_2 = arith.constant 0 : index
    %c0_3 = arith.constant 0 : index
    %4 = vector.load %arg3[%c0_2, %c0_3] : memref<128x128xbf16, #tpu.memory_space<vmem>>, vector<128x128xbf16>
    %c0_4 = arith.constant 0 : index
    %c0_5 = arith.constant 0 : index
    %5 = vector.load %arg10[%c0_4, %c0_5] : memref<128x128xf32, #tpu.memory_space<vmem>>, vector<128x128xf32>
    %cst = arith.constant dense<0.000000e+00> : vector<128x128xf32>
    %6 = tpu.matmul %3, %4, %cst {dimension_numbers = #tpu.dot_dimension_numbers<[1], [0], [0], [1], [0, 0, 1, 1], [], []>} : vector<128x128xbf16>, vector<128x128xbf16>, vector<128x128xf32> -> vector<128x128xf32>
    %7 = arith.addf %5, %6 : vector<128x128xf32>
    %c0_6 = arith.constant 0 : index
    %c0_7 = arith.constant 0 : index
    %8 = vector.load %arg10[%c0_6, %c0_7] : memref<128x128xf32, #tpu.memory_space<vmem>>, vector<128x128xf32>
    tpu.vector_store %arg10[%c0_6, %c0_7], %7 {strides = array<i32>} : memref<128x128xf32, #tpu.memory_space<vmem>>, vector<128x128xf32>,
    %c1_i32 = arith.constant 1 : i32
    %9 = arith.cmpi eq, %arg1, %c1_i32 : i32
    %10 = arith.extui %9 : i1 to i32
    %c0_i32_8 = arith.constant 0 : i32
    %11 = arith.cmpi ne, %10, %c0_i32_8 : i32
    scf.if %11 {
      %c0_9 = arith.constant 0 : index
      %c0_10 = arith.constant 0 : index
      %12 = vector.load %arg10[%c0_9, %c0_10] : memref<128x128xf32, #tpu.memory_space<vmem>>, vector<128x128xf32>
      %c0_11 = arith.constant 0 : index
      %c0_12 = arith.constant 0 : index
      %13 = vector.load %arg5[%c0_11, %c0_12] : memref<128x128xf32, #tpu.memory_space<vmem>>, vector<128x128xf32>
      %cst_13 = arith.constant dense<0.000000e+00> : vector<128x128xf32>
      %14 = tpu.matmul %12, %13, %cst_13 {dimension_numbers = #tpu.dot_dimension_numbers<[1], [0], [0], [1], [0, 0, 1, 1], [], []>} : vector<128x128xf32>, vector<128x128xf32>, vector<128x128xf32> -> vector<128x128xf32>
      %c0_14 = arith.constant 0 : index
      %c0_15 = arith.constant 0 : index
      %15 = vector.load %arg6[%c0_14, %c0_15] : memref<1x128xf32, #tpu.memory_space<vmem>>, vector<1x128xf32>
      %16 = vector.broadcast %15 : vector<1x128xf32> to vector<128x128xf32>
      %17 = arith.addf %14, %16 : vector<128x128xf32>
      %cst_16 = arith.constant dense<0.000000e+00> : vector<128xf32>
      %18 = vector.multi_reduction <add>, %17, %cst_16 [1] : vector<128x128xf32> to vector<128xf32>
      %19 = vector.shape_cast %18 : vector<128xf32> to vector<128x1xf32>
      %cst_17 = arith.constant 1.280000e+02 : f32
      %20 = vector.broadcast %cst_17 : f32 to vector<128x1xf32>
      %21 = arith.divf %19, %20 : vector<128x1xf32>
      %22 = vector.broadcast %21 : vector<128x1xf32> to vector<128x128xf32>
      %23 = arith.subf %17, %22 : vector<128x128xf32>
      %24 = vector.broadcast %21 : vector<128x1xf32> to vector<128x128xf32>
      %25 = arith.subf %17, %24 : vector<128x128xf32>
      %26 = arith.mulf %23, %25 : vector<128x128xf32>
      %cst_18 = arith.constant dense<0.000000e+00> : vector<128xf32>
      %27 = vector.multi_reduction <add>, %26, %cst_18 [1] : vector<128x128xf32> to vector<128xf32>
      %28 = vector.shape_cast %27 : vector<128xf32> to vector<128x1xf32>
      %cst_19 = arith.constant 1.280000e+02 : f32
      %29 = vector.broadcast %cst_19 : f32 to vector<128x1xf32>
      %30 = arith.divf %28, %29 : vector<128x1xf32>
      %31 = vector.broadcast %21 : vector<128x1xf32> to vector<128x128xf32>
      %32 = arith.subf %17, %31 : vector<128x128xf32>
      %cst_20 = arith.constant 9.99999974E-6 : f32
      %33 = vector.broadcast %cst_20 : f32 to vector<128x1xf32>
      %34 = arith.addf %30, %33 : vector<128x1xf32>
      %35 = math.rsqrt %34 : vector<128x1xf32>
      %36 = vector.broadcast %35 : vector<128x1xf32> to vector<128x128xf32>
      %37 = arith.mulf %32, %36 : vector<128x128xf32>
      %c0_21 = arith.constant 0 : index
      %c0_22 = arith.constant 0 : index
      %38 = vector.load %arg7[%c0_21, %c0_22] : memref<1x128xf32, #tpu.memory_space<vmem>>, vector<1x128xf32>
      %39 = vector.broadcast %38 : vector<1x128xf32> to vector<128x128xf32>
      %40 = arith.mulf %37, %39 : vector<128x128xf32>
      %c0_23 = arith.constant 0 : index
      %c0_24 = arith.constant 0 : index
      %41 = vector.load %arg8[%c0_23, %c0_24] : memref<1x128xf32, #tpu.memory_space<vmem>>, vector<1x128xf32>
      %42 = vector.broadcast %41 : vector<1x128xf32> to vector<128x128xf32>
      %43 = arith.addf %40, %42 : vector<128x128xf32>
      %cst_25 = arith.constant 0.000000e+00 : f32
      %44 = vector.broadcast %cst_25 : f32 to vector<128x128xf32>
      %45 = arith.maximumf %43, %44 : vector<128x128xf32>
      %c0_26 = arith.constant 0 : index
      %c0_27 = arith.constant 0 : index
      %46 = vector.load %arg4[%c0_26, %c0_27] : memref<128x128xf32, #tpu.memory_space<vmem>>, vector<128x128xf32>
      %47 = arith.addf %45, %46 : vector<128x128xf32>
      %c0_28 = arith.constant 0 : index
      %c0_29 = arith.constant 0 : index
      %48 = vector.load %arg9[%c0_28, %c0_29] : memref<128x128xf32, #tpu.memory_space<vmem>>, vector<128x128xf32>
      tpu.vector_store %arg9[%c0_28, %c0_29], %47 {strides = array<i32>} : memref<128x128xf32, #tpu.memory_space<vmem>>, vector<128x128xf32>,
    } else {
    }
    return
  }
  func.func @transform_0(%arg0: i32, %arg1: i32) -> (i32, i32) {
    %c0_i32 = arith.constant 0 : i32
    return %arg0, %arg1 : i32, i32
  }
  func.func @transform_1(%arg0: i32, %arg1: i32) -> (i32, i32) {
    %c0_i32 = arith.constant 0 : i32
    %c0_i32_0 = arith.constant 0 : i32
    return %arg1, %c0_i32 : i32, i32
  }
  func.func @transform_2(%arg0: i32, %arg1: i32) -> (i32, i32) {
    %c0_i32 = arith.constant 0 : i32
    %c0_i32_0 = arith.constant 0 : i32
    return %arg0, %c0_i32 : i32, i32
  }
  func.func @transform_3(%arg0: i32, %arg1: i32) -> (i32, i32) {
    %c0_i32 = arith.constant 0 : i32
    %c0_i32_0 = arith.constant 0 : i32
    %c0_i32_1 = arith.constant 0 : i32
    return %c0_i32, %c0_i32_0 : i32, i32
  }
  func.func @transform_4(%arg0: i32, %arg1: i32) -> (i32, i32) {
    %c0_i32 = arith.constant 0 : i32
    %c0_i32_0 = arith.constant 0 : i32
    %c0_i32_1 = arith.constant 0 : i32
    return %c0_i32, %c0_i32_0 : i32, i32
  }
  func.func @transform_5(%arg0: i32, %arg1: i32) -> (i32, i32) {
    %c0_i32 = arith.constant 0 : i32
    %c0_i32_0 = arith.constant 0 : i32
    %c0_i32_1 = arith.constant 0 : i32
    return %c0_i32, %c0_i32_0 : i32, i32
  }
  func.func @transform_6(%arg0: i32, %arg1: i32) -> (i32, i32) {
    %c0_i32 = arith.constant 0 : i32
    %c0_i32_0 = arith.constant 0 : i32
    %c0_i32_1 = arith.constant 0 : i32
    return %c0_i32, %c0_i32_0 : i32, i32
  }
  func.func @transform_7(%arg0: i32, %arg1: i32) -> (i32, i32) {
    %c0_i32 = arith.constant 0 : i32
    %c0_i32_0 = arith.constant 0 : i32
    return %arg0, %c0_i32 : i32, i32
  }
}

</mosaic_0001>

<llo_original>
// kernel: _lambda_.3
$region0: #{_lambda_.3}
  #allocation0 [shape = 'u32[]', space=smem, size = 0x4, offset = 0x4, fixed_abs, tag = 'smem constant byte address 0x4 - core index']
  #allocation1 [shape = 'u32[72,128]{1,0:T(1,128)}', space=vmem, size = 0x9000, scoped, tag = 'internal scratch']
  #allocation2 [shape = 'f32[128,128]{1,0:T(8,128)}', space=vmem, size = 0x10000, scoped, tag = 'scratch operand']
  %s0 = inlined_call_operand.vmem [shape: bf16[256,256], index: 0, kind: input, shape index: {}]
  %s1 = inlined_call_operand.vmem [shape: bf16[256,128], index: 1, kind: input, shape index: {}]
  %s2 = inlined_call_operand.vmem [shape: f32[256,128], index: 2, kind: input, shape index: {}]
  %s3 = inlined_call_operand.vmem [shape: f32[128,128], index: 3, kind: input, shape index: {}]
  %s4 = inlined_call_operand.vmem [shape: f32[1,128], index: 4, kind: input, shape index: {}, may-alias: {4,6}]
  %s5 = inlined_call_operand.vmem [shape: f32[1,128], index: 5, kind: input, shape index: {}]
  %s6 = inlined_call_operand.vmem [shape: f32[1,128], index: 6, kind: input, shape index: {}, may-alias: {4,6}]
  %s7 = inlined_call_operand.hbm [shape: f32[256,128], index: 7, kind: output, shape index: {}]
  %s8 = sld [smem:[#allocation0]]
  $region110: #{_lambda_.3} parent=0
    _
  %s10 = ssub.s32 1, %s8
  %s11 = scalar_select 0, %s10, %s8
  $region1: #{_lambda_.3} parent=0
    #allocation3 [shape = 'u8[65536]{0}', space=vmem, size = 0x10000, scoped, tag = 'input window, operand 0']
    #allocation4 [shape = 'u8[131072]{0}', space=vmem, size = 0x20000, scoped, tag = 'output window, operand 0']
    #allocation5 [shape = 's32[2]{0}', space=sflag, size = 0x8, scoped, tag = 'scoped memory for _lambda_.3']
    %12 = vsyncpa [#allocation5], 0
    %s13 = scalar_lea.sflag [#allocation5], 1
    %14 = vsyncpa %s13, 0
    loop: start=0, step=1, limit=6
    $region2: #{_lambda_.3} parent=1 // loop_pre_header
      _
    $region3: #{_lambda_.3} parent=1 // loop_header
      %s16 = sphi 0, %s20
      %p17 = scmp.ge.s32.totalorder %s16, 6
      %s23 = sphi 0, %s35
      %s24 = sphi 0, %s31
      %s25 = sphi 0, %s23
      %s26 = sphi 0, %s24
      %s27 = sphi 0, %s25
      %s28 = sphi 0, %s26
      %s40 = sphi 0, %s42
      %s43 = sphi 0, %s40
      %s44 = sphi 0, %s43
      %s60 = sphi 0, %s44
      %s66 = sphi 0, %s68
      %s69 = sphi 0, %s66
      %s70 = sphi 0, %s69
      %s86 = sphi 0, %s70
      %s92 = sphi 0, %s94
      %s95 = sphi 0, %s92
      %s96 = sphi 0, %s95
      %s112 = sphi 0, %s96
      %s116 = sphi 0, %s116
      %s118 = sphi 0, %s116
      %s119 = sphi 0, %s118
      %s133 = sphi 0, %s119
      %s137 = sphi 0, %s137
      %s139 = sphi 0, %s137
      %s140 = sphi 0, %s139
      %s154 = sphi 0, %s140
      %s158 = sphi 0, %s158
      %s160 = sphi 0, %s158
      %s161 = sphi 0, %s160
      %s175 = sphi 0, %s161
      %s179 = sphi 0, %s179
      %s181 = sphi 0, %s179
      %s182 = sphi 0, %s181
      %s196 = sphi 0, %s182
      %s202 = sphi 0, %s204
      %s205 = sphi 0, %s202
      %s206 = sphi 0, %s205
      %s222 = sphi 0, %s206
    $region4: #{_lambda_.3} parent=1 // loop_header_branch
      %19 = sbr.rel (%p17) target = $region8
    $region5: #{_lambda_.3} parent=1 // loop_body
      %s21 = ssub.s32 %s16, 1
      %s22 = ssub.s32 %s16, 2
      %s29 = sadd.s32 1, %s24
      %p30 = scmp.ge.s32.totalorder %s29, 2
      %s31 = scalar_select %p30, 0, %s29
      %s32 = sadd.s32 1, %s23
      %s33 = scalar_select %p30, %s32, %s23
      %p34 = scmp.ge.s32.totalorder %s33, 2
      %s35 = scalar_select %p34, 0, %s33
      %s36 = ssub.s32 %s23, %s35
      %s37 = ssub.s32 %s24, %s31
      %s38 = sor.u32 %s36, %s37
      %p39 = scmp.eq.s32.totalorder %s38, 0
      %s41 = sadd.s32 %s40, 1
      %s42 = scalar_select %p39, %s40, %s41
      %p45 = pneg %p39
      %p46 = scmp.eq.s32.totalorder %s16, 3
      %p47 = por %p45, %p46
      %p48 = scmp.ne.s32.totalorder %s40, %s43
      %p49 = scmp.eq.s32.totalorder %s16, 0
      %p50 = por %p48, %p49
      %p51 = scmp.ne.s32.totalorder %s40, %s43
      %p52 = scmp.eq.s32.totalorder %s21, 3
      %p53 = por %p51, %p52
      %p54 = scmp.ne.s32.totalorder %s43, %s44
      %p55 = scmp.eq.s32.totalorder %s21, 0
      %p56 = por %p54, %p55
      %p57 = scmp.ne.s32.totalorder %s43, %s44
      %p58 = scmp.eq.s32.totalorder %s22, 3
      %p59 = por %p57, %p58
      %p61 = scmp.ne.s32.totalorder %s44, %s60
      %p62 = scmp.eq.s32.totalorder %s22, 0
      %p63 = por %p61, %p62
      %s64 = ssub.s32 %s24, %s31
      %p65 = scmp.eq.s32.totalorder %s64, 0
      %s67 = sadd.s32 %s66, 1
      %s68 = scalar_select %p65, %s66, %s67
      %p71 = pneg %p65
      %p72 = scmp.eq.s32.totalorder %s16, 3
      %p73 = por %p71, %p72
      %p74 = scmp.ne.s32.totalorder %s66, %s69
      %p75 = scmp.eq.s32.totalorder %s16, 0
      %p76 = por %p74, %p75
      %p77 = scmp.ne.s32.totalorder %s66, %s69
      %p78 = scmp.eq.s32.totalorder %s21, 3
      %p79 = por %p77, %p78
      %p80 = scmp.ne.s32.totalorder %s69, %s70
      %p81 = scmp.eq.s32.totalorder %s21, 0
      %p82 = por %p80, %p81
      %p83 = scmp.ne.s32.totalorder %s69, %s70
      %p84 = scmp.eq.s32.totalorder %s22, 3
      %p85 = por %p83, %p84
      %p87 = scmp.ne.s32.totalorder %s70, %s86
      %p88 = scmp.eq.s32.totalorder %s22, 0
      %p89 = por %p87, %p88
      %s90 = ssub.s32 %s23, %s35
      %p91 = scmp.eq.s32.totalorder %s90, 0
      %s93 = sadd.s32 %s92, 1
      %s94 = scalar_select %p91, %s92, %s93
      %p97 = pneg %p91
      %p98 = scmp.eq.s32.totalorder %s16, 3
      %p99 = por %p97, %p98
      %p100 = scmp.ne.s32.totalorder %s92, %s95
      %p101 = scmp.eq.s32.totalorder %s16, 0
      %p102 = por %p100, %p101
      %p103 = scmp.ne.s32.totalorder %s92, %s95
      %p104 = scmp.eq.s32.totalorder %s21, 3
      %p105 = por %p103, %p104
      %p106 = scmp.ne.s32.totalorder %s95, %s96
      %p107 = scmp.eq.s32.totalorder %s21, 0
      %p108 = por %p106, %p107
      %p109 = scmp.ne.s32.totalorder %s95, %s96
      %p110 = scmp.eq.s32.totalorder %s22, 3
      %p111 = por %p109, %p110
      %p113 = scmp.ne.s32.totalorder %s96, %s112
      %p114 = scmp.eq.s32.totalorder %s22, 0
      %p115 = por %p113, %p114
      %s117 = sadd.s32 %s116, 1
      %p120 = scmp.eq.s32.totalorder %s16, 3
      %p121 = scmp.ne.s32.totalorder %s116, %s118
      %p122 = scmp.eq.s32.totalorder %s16, 0
      %p123 = por %p121, %p122
      %p124 = scmp.ne.s32.totalorder %s116, %s118
      %p125 = scmp.eq.s32.totalorder %s21, 3
      %p126 = por %p124, %p125
      %p127 = scmp.ne.s32.totalorder %s118, %s119
      %p128 = scmp.eq.s32.totalorder %s21, 0
      %p129 = por %p127, %p128
      %p130 = scmp.ne.s32.totalorder %s118, %s119
      %p131 = scmp.eq.s32.totalorder %s22, 3
      %p132 = por %p130, %p131
      %p134 = scmp.ne.s32.totalorder %s119, %s133
      %p135 = scmp.eq.s32.totalorder %s22, 0
      %p136 = por %p134, %p135
      %s138 = sadd.s32 %s137, 1
      %p141 = scmp.eq.s32.totalorder %s16, 3
      %p142 = scmp.ne.s32.totalorder %s137, %s139
      %p143 = scmp.eq.s32.totalorder %s16, 0
      %p144 = por %p142, %p143
      %p145 = scmp.ne.s32.totalorder %s137, %s139
      %p146 = scmp.eq.s32.totalorder %s21, 3
      %p147 = por %p145, %p146
      %p148 = scmp.ne.s32.totalorder %s139, %s140
      %p149 = scmp.eq.s32.totalorder %s21, 0
      %p150 = por %p148, %p149
      %p151 = scmp.ne.s32.totalorder %s139, %s140
      %p152 = scmp.eq.s32.totalorder %s22, 3
      %p153 = por %p151, %p152
      %p155 = scmp.ne.s32.totalorder %s140, %s154
      %p156 = scmp.eq.s32.totalorder %s22, 0
      %p157 = por %p155, %p156
      %s159 = sadd.s32 %s158, 1
      %p162 = scmp.eq.s32.totalorder %s16, 3
      %p163 = scmp.ne.s32.totalorder %s158, %s160
      %p164 = scmp.eq.s32.totalorder %s16, 0
      %p165 = por %p163, %p164
      %p166 = scmp.ne.s32.totalorder %s158, %s160
      %p167 = scmp.eq.s32.totalorder %s21, 3
      %p168 = por %p166, %p167
      %p169 = scmp.ne.s32.totalorder %s160, %s161
      %p170 = scmp.eq.s32.totalorder %s21, 0
      %p171 = por %p169, %p170
      %p172 = scmp.ne.s32.totalorder %s160, %s161
      %p173 = scmp.eq.s32.totalorder %s22, 3
      %p174 = por %p172, %p173
      %p176 = scmp.ne.s32.totalorder %s161, %s175
      %p177 = scmp.eq.s32.totalorder %s22, 0
      %p178 = por %p176, %p177
      %s180 = sadd.s32 %s179, 1
      %p183 = scmp.eq.s32.totalorder %s16, 3
      %p184 = scmp.ne.s32.totalorder %s179, %s181
      %p185 = scmp.eq.s32.totalorder %s16, 0
      %p186 = por %p184, %p185
      %p187 = scmp.ne.s32.totalorder %s179, %s181
      %p188 = scmp.eq.s32.totalorder %s21, 3
      %p189 = por %p187, %p188
      %p190 = scmp.ne.s32.totalorder %s181, %s182
      %p191 = scmp.eq.s32.totalorder %s21, 0
      %p192 = por %p190, %p191
      %p193 = scmp.ne.s32.totalorder %s181, %s182
      %p194 = scmp.eq.s32.totalorder %s22, 3
      %p195 = por %p193, %p194
      %p197 = scmp.ne.s32.totalorder %s182, %s196
      %p198 = scmp.eq.s32.totalorder %s22, 0
      %p199 = por %p197, %p198
      %s200 = ssub.s32 %s23, %s35
      %p201 = scmp.eq.s32.totalorder %s200, 0
      %s203 = sadd.s32 %s202, 1
      %s204 = scalar_select %p201, %s202, %s203
      %p207 = pneg %p201
      %p208 = scmp.eq.s32.totalorder %s16, 3
      %p209 = por %p207, %p208
      %p210 = scmp.ne.s32.totalorder %s202, %s205
      %p211 = scmp.eq.s32.totalorder %s16, 0
      %p212 = por %p210, %p211
      %p213 = scmp.ne.s32.totalorder %s202, %s205
      %p214 = scmp.eq.s32.totalorder %s21, 3
      %p215 = por %p213, %p214
      %p216 = scmp.ne.s32.totalorder %s205, %s206
      %p217 = scmp.eq.s32.totalorder %s21, 0
      %p218 = por %p216, %p217
      %p219 = scmp.ne.s32.totalorder %s205, %s206
      %p220 = scmp.eq.s32.totalorder %s22, 3
      %p221 = por %p219, %p220
      %p223 = scmp.ne.s32.totalorder %s206, %s222
      %p224 = scmp.eq.s32.totalorder %s22, 0
      %p225 = por %p223, %p224
      %p226 = scmp.le.s32.totalorder 1, %s16
      %p227 = scmp.lt.s32.totalorder %s16, 5
      %p228 = pnand %p226, %p227
      %p229 = pneg %p228
      // Predicated region
      $region9: #{_lambda_.3} parent=5 // pred_check
        _
      $region10: #{_lambda_.3} parent=5 // pred_check_branch
        %231 = sbr.rel (%p228) target = $region12
      $region11: #{_lambda_.3} parent=5 // pred_region
        %s232 = ssub.s32 %s16, 1
        // Predicated region
        $region13: #{_lambda_.3} parent=11 // pred_check
          %p233 = pneg %p129
        $region14: #{_lambda_.3} parent=11 // pred_check_branch
          %235 = sbr.rel (%p233) target = $region16
        $region15: #{_lambda_.3} parent=11 // pred_region
          _
        $region16: #{_lambda_.3} parent=11 // pred_fallthru
          _
        // Predicated region
        $region17: #{_lambda_.3} parent=11 // pred_check
          %p236 = pneg %p150
        $region18: #{_lambda_.3} parent=11 // pred_check_branch
          %238 = sbr.rel (%p236) target = $region20
        $region19: #{_lambda_.3} parent=11 // pred_region
          _
        $region20: #{_lambda_.3} parent=11 // pred_fallthru
          _
        // Predicated region
        $region21: #{_lambda_.3} parent=11 // pred_check
          %p239 = pneg %p171
        $region22: #{_lambda_.3} parent=11 // pred_check_branch
          %241 = sbr.rel (%p239) target = $region24
        $region23: #{_lambda_.3} parent=11 // pred_region
          _
        $region24: #{_lambda_.3} parent=11 // pred_fallthru
          _
        // Predicated region
        $region25: #{_lambda_.3} parent=11 // pred_check
          %p242 = pneg %p192
        $region26: #{_lambda_.3} parent=11 // pred_check_branch
          %244 = sbr.rel (%p242) target = $region28
        $region27: #{_lambda_.3} parent=11 // pred_region
          _
        $region28: #{_lambda_.3} parent=11 // pred_fallthru
          _
      $region12: #{_lambda_.3} parent=5 // pred_fallthru
        _
      %p245 = scmp.lt.s32.totalorder %s16, 4
      // Predicated region
      $region29: #{_lambda_.3} parent=5 // pred_check
        %p246 = pneg %p245
      $region30: #{_lambda_.3} parent=5 // pred_check_branch
        %248 = sbr.rel (%p246) target = $region32
      $region31: #{_lambda_.3} parent=5 // pred_region
        // Predicated region
        $region33: #{_lambda_.3} parent=31 // pred_check
          %p249 = pneg %p50
        $region34: #{_lambda_.3} parent=31 // pred_check_branch
          %251 = sbr.rel (%p249) target = $region36
        $region35: #{_lambda_.3} parent=31 // pred_region
          %s252 = sand.u32 %s40, 1
          %s253 = sand.u32 %s40, 1
          %s254 = smul.addr %s253, 64
          %s255 = scalar_lea.vmem [#allocation3], %s254
          %s256 = smul.u32 16, %s23
          %s257 = smul.addr %s256, 2
          %s258 = sadd.s32 %s24, %s257
          %s259 = smul.addr %s258, 4
          %s260 = scalar_lea.vmem %s0, %s259
          // Predicated region
          $region37: #{_lambda_.3} parent=35 // pred_check
            _
          $region38: #{_lambda_.3} parent=35 // pred_check_branch
            %262 = sbr.rel (0) target = $region40
          $region39: #{_lambda_.3} parent=35 // pred_region
            // Predicated region
            $region41: #{_lambda_.3} parent=39 // pred_check
              _
            $region42: #{_lambda_.3} parent=39 // pred_check_branch
              %264 = sbr.rel target = $region44
            $region43: #{_lambda_.3} parent=39 // pred_region
              // Predicated region
              $region56: #{_lambda_.3} parent=43 // pred_check
                _
              $region57: #{_lambda_.3} parent=43 // pred_check_branch
                %310 = sbr.rel (0) target = $region59
              $region58: #{_lambda_.3} parent=43 // pred_region
                loop: start=0, step=1, limit=1
                $region60: #{_lambda_.3} parent=58 // loop_pre_header
                  _
                $region61: #{_lambda_.3} parent=58 // loop_header
                  %s312 = sphi 0, %s316
                  %p313 = scmp.ge.s32.totalorder %s312, 1
                  %s317 = sphi %s260, %s260
                  %s318 = sphi %s255, %s255
                $region62: #{_lambda_.3} parent=58 // loop_header_branch
                  %315 = sbr.rel (%p313) target = $region66
                $region63: #{_lambda_.3} parent=58 // loop_body
                  _
                $region64: #{_lambda_.3} parent=58 // loop_footer
                  %s316 = sadd.s32 1, %s312
                $region65: #{_lambda_.3} parent=58 // loop_footer_branch
                  %311 = sbr.rel target = $region61
                $region66: #{_lambda_.3} parent=58 // loop_exit
                  _
                %s320 = ssub.s32 16, 1
                loop: start=0, step=1, limit=1
                $region67: #{_lambda_.3} parent=58 // loop_pre_header
                  _
                $region68: #{_lambda_.3} parent=58 // loop_header
                  %s322 = sphi 0, %s326
                  %p323 = scmp.ge.s32.totalorder %s322, 1
                  %s327 = sphi %s260, %s260
                  %s328 = sphi %s255, %s255
                $region69: #{_lambda_.3} parent=58 // loop_header_branch
                  %325 = sbr.rel (%p323) target = $region73
                $region70: #{_lambda_.3} parent=58 // loop_body
                  %v329 = vld [vmem:[%s327] sm:%s320]
                  %330 = vst [vmem:[%s328] sm:%s320] %v329
                  %v331 = vld [vmem:[%s327 + $0x8] sm:%s320]
                  %332 = vst [vmem:[%s328 + $0x4] sm:%s320] %v331
                  %v333 = vld [vmem:[%s327 + $0x10] sm:%s320]
                  %334 = vst [vmem:[%s328 + $0x8] sm:%s320] %v333
                  %v335 = vld [vmem:[%s327 + $0x18] sm:%s320]
                  %336 = vst [vmem:[%s328 + $0xc] sm:%s320] %v335
                  %v337 = vld [vmem:[%s327 + $0x20] sm:%s320]
                  %338 = vst [vmem:[%s328 + $0x10] sm:%s320] %v337
                  %v339 = vld [vmem:[%s327 + $0x28] sm:%s320]
                  %340 = vst [vmem:[%s328 + $0x14] sm:%s320] %v339
                  %v341 = vld [vmem:[%s327 + $0x30] sm:%s320]
                  %342 = vst [vmem:[%s328 + $0x18] sm:%s320] %v341
                  %v343 = vld [vmem:[%s327 + $0x38] sm:%s320]
                  %344 = vst [vmem:[%s328 + $0x1c] sm:%s320] %v343
                  %v345 = vld [vmem:[%s327 + $0x40] sm:%s320]
                  %346 = vst [vmem:[%s328 + $0x20] sm:%s320] %v345
                  %v347 = vld [vmem:[%s327 + $0x48] sm:%s320]
                  %348 = vst [vmem:[%s328 + $0x24] sm:%s320] %v347
                  %v349 = vld [vmem:[%s327 + $0x50] sm:%s320]
                  %350 = vst [vmem:[%s328 + $0x28] sm:%s320] %v349
                  %v351 = vld [vmem:[%s327 + $0x58] sm:%s320]
                  %352 = vst [vmem:[%s328 + $0x2c] sm:%s320] %v351
                  %v353 = vld [vmem:[%s327 + $0x60] sm:%s320]
                  %354 = vst [vmem:[%s328 + $0x30] sm:%s320] %v353
                  %v355 = vld [vmem:[%s327 + $0x68] sm:%s320]
                  %356 = vst [vmem:[%s328 + $0x34] sm:%s320] %v355
                  %v357 = vld [vmem:[%s327 + $0x70] sm:%s320]
                  %358 = vst [vmem:[%s328 + $0x38] sm:%s320] %v357
                  %v359 = vld [vmem:[%s327 + $0x78] sm:%s320]
                  %360 = vst [vmem:[%s328 + $0x3c] sm:%s320] %v359
                $region71: #{_lambda_.3} parent=58 // loop_footer
                  %s326 = sadd.s32 1, %s322
                $region72: #{_lambda_.3} parent=58 // loop_footer_branch
                  %321 = sbr.rel target = $region68
                $region73: #{_lambda_.3} parent=58 // loop_exit
                  _
              $region59: #{_lambda_.3} parent=43 // pred_fallthru
                _
            $region44: #{_lambda_.3} parent=39 // pred_fallthru
              _
            // Predicated region
            $region45: #{_lambda_.3} parent=39 // pred_check
              _
            $region46: #{_lambda_.3} parent=39 // pred_check_branch
              %266 = sbr.rel (0) target = $region48
            $region47: #{_lambda_.3} parent=39 // pred_region
              %s268 = ssub.s32 16, 1
              loop: start=0, step=1, limit=1
              $region49: #{_lambda_.3} parent=47 // loop_pre_header
                _
              $region50: #{_lambda_.3} parent=47 // loop_header
                %s270 = sphi 0, %s274
                %p271 = scmp.ge.s32.totalorder %s270, 1
                %s275 = sphi %s260, %s260
                %s276 = sphi %s255, %s255
              $region51: #{_lambda_.3} parent=47 // loop_header_branch
                %273 = sbr.rel (%p271) target = $region55
              $region52: #{_lambda_.3} parent=47 // loop_body
                %v277 = vld [vmem:[%s275] sm:%s268]
                %278 = vst [vmem:[%s276] sm:%s268] %v277
                %v279 = vld [vmem:[%s275 + $0x8] sm:%s268]
                %280 = vst [vmem:[%s276 + $0x4] sm:%s268] %v279
                %v281 = vld [vmem:[%s275 + $0x10] sm:%s268]
                %282 = vst [vmem:[%s276 + $0x8] sm:%s268] %v281
                %v283 = vld [vmem:[%s275 + $0x18] sm:%s268]
                %284 = vst [vmem:[%s276 + $0xc] sm:%s268] %v283
                %v285 = vld [vmem:[%s275 + $0x20] sm:%s268]
                %286 = vst [vmem:[%s276 + $0x10] sm:%s268] %v285
                %v287 = vld [vmem:[%s275 + $0x28] sm:%s268]
                %288 = vst [vmem:[%s276 + $0x14] sm:%s268] %v287
                %v289 = vld [vmem:[%s275 + $0x30] sm:%s268]
                %290 = vst [vmem:[%s276 + $0x18] sm:%s268] %v289
                %v291 = vld [vmem:[%s275 + $0x38] sm:%s268]
                %292 = vst [vmem:[%s276 + $0x1c] sm:%s268] %v291
                %v293 = vld [vmem:[%s275 + $0x40] sm:%s268]
                %294 = vst [vmem:[%s276 + $0x20] sm:%s268] %v293
                %v295 = vld [vmem:[%s275 + $0x48] sm:%s268]
                %296 = vst [vmem:[%s276 + $0x24] sm:%s268] %v295
                %v297 = vld [vmem:[%s275 + $0x50] sm:%s268]
                %298 = vst [vmem:[%s276 + $0x28] sm:%s268] %v297
                %v299 = vld [vmem:[%s275 + $0x58] sm:%s268]
                %300 = vst [vmem:[%s276 + $0x2c] sm:%s268] %v299
                %v301 = vld [vmem:[%s275 + $0x60] sm:%s268]
                %302 = vst [vmem:[%s276 + $0x30] sm:%s268] %v301
                %v303 = vld [vmem:[%s275 + $0x68] sm:%s268]
                %304 = vst [vmem:[%s276 + $0x34] sm:%s268] %v303
                %v305 = vld [vmem:[%s275 + $0x70] sm:%s268]
                %306 = vst [vmem:[%s276 + $0x38] sm:%s268] %v305
                %v307 = vld [vmem:[%s275 + $0x78] sm:%s268]
                %308 = vst [vmem:[%s276 + $0x3c] sm:%s268] %v307
              $region53: #{_lambda_.3} parent=47 // loop_footer
                %s274 = sadd.s32 1, %s270
              $region54: #{_lambda_.3} parent=47 // loop_footer_branch
                %269 = sbr.rel target = $region50
              $region55: #{_lambda_.3} parent=47 // loop_exit
                _
            $region48: #{_lambda_.3} parent=39 // pred_fallthru
              _
          $region40: #{_lambda_.3} parent=35 // pred_fallthru
            _
          %361 = vnop
        $region36: #{_lambda_.3} parent=31 // pred_fallthru
          _
        // Predicated region
        $region74: #{_lambda_.3} parent=31 // pred_check
          %p362 = pneg %p76
        $region75: #{_lambda_.3} parent=31 // pred_check_branch
          %364 = sbr.rel (%p362) target = $region77
        $region76: #{_lambda_.3} parent=31 // pred_region
          %s365 = smul.u32 16, %s24
          %p366 = scmp.lt.s32.totalorder %s365, 31
          %s367 = scalar_select %p366, %s365, 31
          %s368 = smul.addr %s367, 4
          %s369 = scalar_lea.vmem %s1, %s368
          %s370 = smul.u32 16, %s24
        $region77: #{_lambda_.3} parent=31 // pred_fallthru
          _
        // Predicated region
        $region78: #{_lambda_.3} parent=31 // pred_check
          %p371 = pneg %p102
        $region79: #{_lambda_.3} parent=31 // pred_check_branch
          %373 = sbr.rel (%p371) target = $region81
        $region80: #{_lambda_.3} parent=31 // pred_region
          %s374 = smul.u32 16, %s23
          %p375 = scmp.lt.s32.totalorder %s374, 31
          %s376 = scalar_select %p375, %s374, 31
          %s377 = smul.addr %s376, 8
          %s378 = scalar_lea.vmem %s2, %s377
          %s379 = smul.u32 16, %s23
        $region81: #{_lambda_.3} parent=31 // pred_fallthru
          _
      $region32: #{_lambda_.3} parent=5 // pred_fallthru
        _
      %p380 = scmp.le.s32.totalorder 1, %s16
      %p381 = scmp.lt.s32.totalorder %s16, 5
      %p382 = pnand %p380, %p381
      %p383 = pneg %p382
      // Predicated region
      $region82: #{_lambda_.3} parent=5 // pred_check
        _
      $region83: #{_lambda_.3} parent=5 // pred_check_branch
        %385 = sbr.rel (%p382) target = $region85
      $region84: #{_lambda_.3} parent=5 // pred_region
        %s386 = ssub.s32 %s16, 1
        %s387 = sand.u32 %s43, 1
        %s388 = sand.u32 %s43, 1
        %s389 = smul.addr %s388, 64
        %s390 = scalar_lea.vmem [#allocation3], %s389
        // Predicated region
        $region86: #{_lambda_.3} parent=84 // pred_check
          %p391 = pneg %p56
        $region87: #{_lambda_.3} parent=84 // pred_check_branch
          %393 = sbr.rel (%p391) target = $region89
        $region88: #{_lambda_.3} parent=84 // pred_region
          _
        $region89: #{_lambda_.3} parent=84 // pred_fallthru
          _
        %s394 = sand.u32 %s43, 1
        %s395 = sand.u32 %s43, 1
        %s396 = smul.addr %s395, 64
        %s397 = scalar_lea.vmem [#allocation3], %s396
        %p398 = pneg %p56
        %p399 = pneg %p53
        %s400 = smul.u32 16, %s26
        %p401 = scmp.lt.s32.totalorder %s400, 31
        %s402 = scalar_select %p401, %s400, 31
        %s403 = smul.addr %s402, 4
        %s404 = scalar_lea.vmem %s1, %s403
        %p405 = pneg %p82
        %p406 = pneg %p79
        %s407 = smul.u32 16, %s25
        %p408 = scmp.lt.s32.totalorder %s407, 31
        %s409 = scalar_select %p408, %s407, 31
        %s410 = smul.addr %s409, 8
        %s411 = scalar_lea.vmem %s2, %s410
        %p412 = pneg %p108
        %p413 = pneg %p105
        %p414 = pneg %p129
        %p415 = pneg %p126
        %p416 = pneg %p150
        %p417 = pneg %p147
        %p418 = pneg %p171
        %p419 = pneg %p168
        %p420 = pneg %p192
        %p421 = pneg %p189
        %p422 = pneg %p218
        %p423 = pneg %p215
        %s424 = sand.u32 %s205, 1
        %s425 = scalar_lea.sflag [#allocation5], %s424
        %s426 = sand.u32 %s205, 1
        %s427 = smul.addr %s426, 128
        %s428 = scalar_lea.vmem [#allocation4], %s427
        %s429 = smul.u32 16, %s25
        %s430 = smul.u32 16, %s26
        %p431 = scmp.lt.s32.totalorder %s430, 31
        %s432 = scalar_select %p431, %s430, 31
        %s433 = smul.addr %s432, 4
        %s434 = scalar_lea.vmem %s1, %s433
        %s435 = smul.u32 16, %s26
        %s436 = smul.u32 16, %s25
        %p437 = scmp.lt.s32.totalorder %s436, 31
        %s438 = scalar_select %p437, %s436, 31
        %s439 = smul.addr %s438, 8
        %s440 = scalar_lea.vmem %s2, %s439
        %s441 = smul.u32 16, %s25
        %s442 = smul.u32 16, %s25
        %p443 = scmp.eq.s32.totalorder %s26, 0
        // Predicated region
        $region90: #{_lambda_.3} parent=84 // pred_check
          %p444 = pneg %p443
        $region91: #{_lambda_.3} parent=84 // pred_check_branch
          %446 = sbr.rel (%p444) target = $region93
        $region92: #{_lambda_.3} parent=84 // pred_region
          %447 = vst [vmem:[#allocation2] sm:$0xff] 0.0
          %448 = vst [vmem:[#allocation2 + $0x8] sm:$0xff] 0.0
          %449 = vst [vmem:[#allocation2 + $0x10] sm:$0xff] 0.0
          %450 = vst [vmem:[#allocation2 + $0x18] sm:$0xff] 0.0
          %451 = vst [vmem:[#allocation2 + $0x20] sm:$0xff] 0.0
          %452 = vst [vmem:[#allocation2 + $0x28] sm:$0xff] 0.0
          %453 = vst [vmem:[#allocation2 + $0x30] sm:$0xff] 0.0
          %454 = vst [vmem:[#allocation2 + $0x38] sm:$0xff] 0.0
          %455 = vst [vmem:[#allocation2 + $0x40] sm:$0xff] 0.0
          %456 = vst [vmem:[#allocation2 + $0x48] sm:$0xff] 0.0
          %457 = vst [vmem:[#allocation2 + $0x50] sm:$0xff] 0.0
          %458 = vst [vmem:[#allocation2 + $0x58] sm:$0xff] 0.0
          %459 = vst [vmem:[#allocation2 + $0x60] sm:$0xff] 0.0
          %460 = vst [vmem:[#allocation2 + $0x68] sm:$0xff] 0.0
          %461 = vst [vmem:[#allocation2 + $0x70] sm:$0xff] 0.0
          %462 = vst [vmem:[#allocation2 + $0x78] sm:$0xff] 0.0
        $region93: #{_lambda_.3} parent=84 // pred_fallthru
          _
        %v463 = vld [vmem:[%s390] sm:$0xf]
        %v464 = vld [vmem:[%s390 + $0x4] sm:$0xf]
        %v465 = vld [vmem:[%s390 + $0x8] sm:$0xf]
        %v466 = vld [vmem:[%s390 + $0xc] sm:$0xf]
        %v467 = vld [vmem:[%s390 + $0x10] sm:$0xf]
        %v468 = vld [vmem:[%s390 + $0x14] sm:$0xf]
        %v469 = vld [vmem:[%s390 + $0x18] sm:$0xf]
        %v470 = vld [vmem:[%s390 + $0x1c] sm:$0xf]
        %v471 = vld [vmem:[%s390 + $0x20] sm:$0xf]
        %v472 = vld [vmem:[%s390 + $0x24] sm:$0xf]
        %v473 = vld [vmem:[%s390 + $0x28] sm:$0xf]
        %v474 = vld [vmem:[%s390 + $0x2c] sm:$0xf]
        %v475 = vld [vmem:[%s390 + $0x30] sm:$0xf]
        %v476 = vld [vmem:[%s390 + $0x34] sm:$0xf]
        %v477 = vld [vmem:[%s390 + $0x38] sm:$0xf]
        %v478 = vld [vmem:[%s390 + $0x3c] sm:$0xf]
        %v479 = vld [vmem:[%s434] sm:$0xf]
        %v480 = vld [vmem:[%s434 + $0x4] sm:$0xf]
        %v481 = vld [vmem:[%s434 + $0x8] sm:$0xf]
        %v482 = vld [vmem:[%s434 + $0xc] sm:$0xf]
        %v483 = vld [vmem:[%s434 + $0x10] sm:$0xf]
        %v484 = vld [vmem:[%s434 + $0x14] sm:$0xf]
        %v485 = vld [vmem:[%s434 + $0x18] sm:$0xf]
        %v486 = vld [vmem:[%s434 + $0x1c] sm:$0xf]
        %v487 = vld [vmem:[%s434 + $0x20] sm:$0xf]
        %v488 = vld [vmem:[%s434 + $0x24] sm:$0xf]
        %v489 = vld [vmem:[%s434 + $0x28] sm:$0xf]
        %v490 = vld [vmem:[%s434 + $0x2c] sm:$0xf]
        %v491 = vld [vmem:[%s434 + $0x30] sm:$0xf]
        %v492 = vld [vmem:[%s434 + $0x34] sm:$0xf]
        %v493 = vld [vmem:[%s434 + $0x38] sm:$0xf]
        %v494 = vld [vmem:[%s434 + $0x3c] sm:$0xf]
        %v495 = vld [vmem:[#allocation2] sm:$0xff]
        %v496 = vld [vmem:[#allocation2 + $0x8] sm:$0xff]
        %v497 = vld [vmem:[#allocation2 + $0x10] sm:$0xff]
        %v498 = vld [vmem:[#allocation2 + $0x18] sm:$0xff]
        %v499 = vld [vmem:[#allocation2 + $0x20] sm:$0xff]
        %v500 = vld [vmem:[#allocation2 + $0x28] sm:$0xff]
        %v501 = vld [vmem:[#allocation2 + $0x30] sm:$0xff]
        %v502 = vld [vmem:[#allocation2 + $0x38] sm:$0xff]
        %v503 = vld [vmem:[#allocation2 + $0x40] sm:$0xff]
        %v504 = vld [vmem:[#allocation2 + $0x48] sm:$0xff]
        %v505 = vld [vmem:[#allocation2 + $0x50] sm:$0xff]
        %v506 = vld [vmem:[#allocation2 + $0x58] sm:$0xff]
        %v507 = vld [vmem:[#allocation2 + $0x60] sm:$0xff]
        %v508 = vld [vmem:[#allocation2 + $0x68] sm:$0xff]
        %v509 = vld [vmem:[#allocation2 + $0x70] sm:$0xff]
        %v510 = vld [vmem:[#allocation2 + $0x78] sm:$0xff]
        %v527 = vunpack.c.l.b16 %v463
        %v528 = vunpack.c.l.b16 %v464
        %v529 = vunpack.c.l.b16 %v465
        %v530 = vunpack.c.l.b16 %v466
        %v531 = vunpack.c.l.b16 %v467
        %v532 = vunpack.c.l.b16 %v468
        %v533 = vunpack.c.l.b16 %v469
        %v534 = vunpack.c.l.b16 %v470
        %v535 = vunpack.c.l.b16 %v471
        %v536 = vunpack.c.l.b16 %v472
        %v537 = vunpack.c.l.b16 %v473
        %v538 = vunpack.c.l.b16 %v474
        %v539 = vunpack.c.l.b16 %v475
        %v540 = vunpack.c.l.b16 %v476
        %v541 = vunpack.c.l.b16 %v477
        %v542 = vunpack.c.l.b16 %v478
        %v543 = vpack.c.b16 %v528, %v527
        %v544 = vpack.c.b16 %v530, %v529
        %v545 = vpack.c.b16 %v532, %v531
        %v546 = vpack.c.b16 %v534, %v533
        %v547 = vpack.c.b16 %v536, %v535
        %v548 = vpack.c.b16 %v538, %v537
        %v549 = vpack.c.b16 %v540, %v539
        %v550 = vpack.c.b16 %v542, %v541
        %v575 = vunpack.c.l.b16 %v479
        %v576 = vunpack.c.l.b16 %v480
        %v577 = vunpack.c.l.b16 %v481
        %v578 = vunpack.c.l.b16 %v482
        %v579 = vunpack.c.l.b16 %v483
        %v580 = vunpack.c.l.b16 %v484
        %v581 = vunpack.c.l.b16 %v485
        %v582 = vunpack.c.l.b16 %v486
        %v583 = vunpack.c.l.b16 %v487
        %v584 = vunpack.c.l.b16 %v488
        %v585 = vunpack.c.l.b16 %v489
        %v586 = vunpack.c.l.b16 %v490
        %v587 = vunpack.c.l.b16 %v491
        %v588 = vunpack.c.l.b16 %v492
        %v589 = vunpack.c.l.b16 %v493
        %v590 = vunpack.c.l.b16 %v494
        %v591 = vpack.c.b16 %v576, %v575
        %v592 = vpack.c.b16 %v578, %v577
        %v593 = vpack.c.b16 %v580, %v579
        %v594 = vpack.c.b16 %v582, %v581
        %v595 = vpack.c.b16 %v584, %v583
        %v596 = vpack.c.b16 %v586, %v585
        %v597 = vpack.c.b16 %v588, %v587
        %v598 = vpack.c.b16 %v590, %v589
        %607 = vmatpush.bf16.msra.mxu0 %v598
        %608 = vmatpush.bf16.msra.mxu0 %v597
        %609 = vmatpush.bf16.msra.mxu0 %v596
        %610 = vmatpush.bf16.msra.mxu0 %v595
        %611 = vmatpush.bf16.msra.mxu0 %v594
        %612 = vmatpush.bf16.msra.mxu0 %v593
        %613 = vmatpush.bf16.msra.mxu0 %v592
        %614 = vmatpush.bf16.msra.mxu0 %v591
        %615 = vmatmul.bf16.gmra.mxu0 %v543
        %v616 = vpop.f32.mrf.mxu0
        %v617 = vadd.f32 0.0, %v616
        %v618 = vpop.f32.mrf.mxu0
        %v619 = vadd.f32 0.0, %v618
        %620 = vmatmul.bf16.gmra.mxu0 %v544
        %v621 = vpop.f32.mrf.mxu0
        %v622 = vadd.f32 0.0, %v621
        %v623 = vpop.f32.mrf.mxu0
        %v624 = vadd.f32 0.0, %v623
        %625 = vmatmul.bf16.gmra.mxu0 %v545
        %v626 = vpop.f32.mrf.mxu0
        %v627 = vadd.f32 0.0, %v626
        %v628 = vpop.f32.mrf.mxu0
        %v629 = vadd.f32 0.0, %v628
        %630 = vmatmul.bf16.gmra.mxu0 %v546
        %v631 = vpop.f32.mrf.mxu0
        %v632 = vadd.f32 0.0, %v631
        %v633 = vpop.f32.mrf.mxu0
        %v634 = vadd.f32 0.0, %v633
        %635 = vmatmul.bf16.gmra.mxu0 %v547
        %v636 = vpop.f32.mrf.mxu0
        %v637 = vadd.f32 0.0, %v636
        %v638 = vpop.f32.mrf.mxu0
        %v639 = vadd.f32 0.0, %v638
        %640 = vmatmul.bf16.gmra.mxu0 %v548
        %v641 = vpop.f32.mrf.mxu0
        %v642 = vadd.f32 0.0, %v641
        %v643 = vpop.f32.mrf.mxu0
        %v644 = vadd.f32 0.0, %v643
        %645 = vmatmul.bf16.gmra.mxu0 %v549
        %v646 = vpop.f32.mrf.mxu0
        %v647 = vadd.f32 0.0, %v646
        %v648 = vpop.f32.mrf.mxu0
        %v649 = vadd.f32 0.0, %v648
        %650 = vmatmul.bf16.gmra.mxu0 %v550
        %v651 = vpop.f32.mrf.mxu0
        %v652 = vadd.f32 0.0, %v651
        %v653 = vpop.f32.mrf.mxu0
        %v654 = vadd.f32 0.0, %v653
        %655 = vdwg.mxu0
        %v656 = vadd.f32 %v495, %v617
        %v657 = vadd.f32 %v496, %v619
        %v658 = vadd.f32 %v497, %v622
        %v659 = vadd.f32 %v498, %v624
        %v660 = vadd.f32 %v499, %v627
        %v661 = vadd.f32 %v500, %v629
        %v662 = vadd.f32 %v501, %v632
        %v663 = vadd.f32 %v502, %v634
        %v664 = vadd.f32 %v503, %v637
        %v665 = vadd.f32 %v504, %v639
        %v666 = vadd.f32 %v505, %v642
        %v667 = vadd.f32 %v506, %v644
        %v668 = vadd.f32 %v507, %v647
        %v669 = vadd.f32 %v508, %v649
        %v670 = vadd.f32 %v509, %v652
        %v671 = vadd.f32 %v510, %v654
        %672 = vst [vmem:[#allocation2] sm:$0xff] %v656
        %673 = vst [vmem:[#allocation2 + $0x8] sm:$0xff] %v657
        %674 = vst [vmem:[#allocation2 + $0x10] sm:$0xff] %v658
        %675 = vst [vmem:[#allocation2 + $0x18] sm:$0xff] %v659
        %676 = vst [vmem:[#allocation2 + $0x20] sm:$0xff] %v660
        %677 = vst [vmem:[#allocation2 + $0x28] sm:$0xff] %v661
        %678 = vst [vmem:[#allocation2 + $0x30] sm:$0xff] %v662
        %679 = vst [vmem:[#allocation2 + $0x38] sm:$0xff] %v663
        %680 = vst [vmem:[#allocation2 + $0x40] sm:$0xff] %v664
        %681 = vst [vmem:[#allocation2 + $0x48] sm:$0xff] %v665
        %682 = vst [vmem:[#allocation2 + $0x50] sm:$0xff] %v666
        %683 = vst [vmem:[#allocation2 + $0x58] sm:$0xff] %v667
        %684 = vst [vmem:[#allocation2 + $0x60] sm:$0xff] %v668
        %685 = vst [vmem:[#allocation2 + $0x68] sm:$0xff] %v669
        %686 = vst [vmem:[#allocation2 + $0x70] sm:$0xff] %v670
        %687 = vst [vmem:[#allocation2 + $0x78] sm:$0xff] %v671
        %p688 = scmp.eq.s32.totalorder %s26, 1
        // Predicated region
        $region94: #{_lambda_.3} parent=84 // pred_check
          %p689 = pneg %p688
        $region95: #{_lambda_.3} parent=84 // pred_check_branch
          %691 = sbr.rel (%p689) target = $region97
        $region96: #{_lambda_.3} parent=84 // pred_region
          %v692 = vld [vmem:[#allocation2] sm:$0xff]
          %v693 = vld [vmem:[#allocation2 + $0x8] sm:$0xff]
          %v694 = vld [vmem:[#allocation2 + $0x10] sm:$0xff]
          %v695 = vld [vmem:[#allocation2 + $0x18] sm:$0xff]
          %v696 = vld [vmem:[#allocation2 + $0x20] sm:$0xff]
          %v697 = vld [vmem:[#allocation2 + $0x28] sm:$0xff]
          %v698 = vld [vmem:[#allocation2 + $0x30] sm:$0xff]
          %v699 = vld [vmem:[#allocation2 + $0x38] sm:$0xff]
          %v700 = vld [vmem:[#allocation2 + $0x40] sm:$0xff]
          %v701 = vld [vmem:[#allocation2 + $0x48] sm:$0xff]
          %v702 = vld [vmem:[#allocation2 + $0x50] sm:$0xff]
          %v703 = vld [vmem:[#allocation2 + $0x58] sm:$0xff]
          %v704 = vld [vmem:[#allocation2 + $0x60] sm:$0xff]
          %v705 = vld [vmem:[#allocation2 + $0x68] sm:$0xff]
          %v706 = vld [vmem:[#allocation2 + $0x70] sm:$0xff]
          %v707 = vld [vmem:[#allocation2 + $0x78] sm:$0xff]
          %v708 = vld [vmem:[%s3] sm:$0xff]
          %v709 = vld [vmem:[%s3 + $0x8] sm:$0xff]
          %v710 = vld [vmem:[%s3 + $0x10] sm:$0xff]
          %v711 = vld [vmem:[%s3 + $0x18] sm:$0xff]
          %v712 = vld [vmem:[%s3 + $0x20] sm:$0xff]
          %v713 = vld [vmem:[%s3 + $0x28] sm:$0xff]
          %v714 = vld [vmem:[%s3 + $0x30] sm:$0xff]
          %v715 = vld [vmem:[%s3 + $0x38] sm:$0xff]
          %v716 = vld [vmem:[%s3 + $0x40] sm:$0xff]
          %v717 = vld [vmem:[%s3 + $0x48] sm:$0xff]
          %v718 = vld [vmem:[%s3 + $0x50] sm:$0xff]
          %v719 = vld [vmem:[%s3 + $0x58] sm:$0xff]
          %v720 = vld [vmem:[%s3 + $0x60] sm:$0xff]
          %v721 = vld [vmem:[%s3 + $0x68] sm:$0xff]
          %v722 = vld [vmem:[%s3 + $0x70] sm:$0xff]
          %v723 = vld [vmem:[%s3 + $0x78] sm:$0xff]
          %v724 = vld [vmem:[%s4] sm:$0x1]
          %v726 = vperm.slane %v724, 0
          %728 = vmatpush.msra.mxu0 %v723
          %729 = vmatpush.msra.mxu0 %v722
          %730 = vmatpush.msra.mxu0 %v721
          %731 = vmatpush.msra.mxu0 %v720
          %732 = vmatpush.msra.mxu0 %v719
          %733 = vmatpush.msra.mxu0 %v718
          %734 = vmatpush.msra.mxu0 %v717
          %735 = vmatpush.msra.mxu0 %v716
          %736 = vmatpush.msra.mxu0 %v715
          %737 = vmatpush.msra.mxu0 %v714
          %738 = vmatpush.msra.mxu0 %v713
          %739 = vmatpush.msra.mxu0 %v712
          %740 = vmatpush.msra.mxu0 %v711
          %741 = vmatpush.msra.mxu0 %v710
          %742 = vmatpush.msra.mxu0 %v709
          %743 = vmatpush.msra.mxu0 %v708
          %744 = vmatmul.f32.gmra.mxu0 %v692
          %v745 = vpop.f32.mrf.mxu0
          %v746 = vadd.f32 %v726, %v745
          %747 = vmatmul.f32.gmra.mxu0 %v693
          %v748 = vpop.f32.mrf.mxu0
          %v749 = vadd.f32 %v726, %v748
          %750 = vmatmul.f32.gmra.mxu0 %v694
          %v751 = vpop.f32.mrf.mxu0
          %v752 = vadd.f32 %v726, %v751
          %753 = vmatmul.f32.gmra.mxu0 %v695
          %v754 = vpop.f32.mrf.mxu0
          %v755 = vadd.f32 %v726, %v754
          %756 = vmatmul.f32.gmra.mxu0 %v696
          %v757 = vpop.f32.mrf.mxu0
          %v758 = vadd.f32 %v726, %v757
          %759 = vmatmul.f32.gmra.mxu0 %v697
          %v760 = vpop.f32.mrf.mxu0
          %v761 = vadd.f32 %v726, %v760
          %762 = vmatmul.f32.gmra.mxu0 %v698
          %v763 = vpop.f32.mrf.mxu0
          %v764 = vadd.f32 %v726, %v763
          %765 = vmatmul.f32.gmra.mxu0 %v699
          %v766 = vpop.f32.mrf.mxu0
          %v767 = vadd.f32 %v726, %v766
          %768 = vmatmul.f32.gmra.mxu0 %v700
          %v769 = vpop.f32.mrf.mxu0
          %v770 = vadd.f32 %v726, %v769
          %771 = vmatmul.f32.gmra.mxu0 %v701
          %v772 = vpop.f32.mrf.mxu0
          %v773 = vadd.f32 %v726, %v772
          %774 = vmatmul.f32.gmra.mxu0 %v702
          %v775 = vpop.f32.mrf.mxu0
          %v776 = vadd.f32 %v726, %v775
          %777 = vmatmul.f32.gmra.mxu0 %v703
          %v778 = vpop.f32.mrf.mxu0
          %v779 = vadd.f32 %v726, %v778
          %780 = vmatmul.f32.gmra.mxu0 %v704
          %v781 = vpop.f32.mrf.mxu0
          %v782 = vadd.f32 %v726, %v781
          %783 = vmatmul.f32.gmra.mxu0 %v705
          %v784 = vpop.f32.mrf.mxu0
          %v785 = vadd.f32 %v726, %v784
          %786 = vmatmul.f32.gmra.mxu0 %v706
          %v787 = vpop.f32.mrf.mxu0
          %v788 = vadd.f32 %v726, %v787
          %789 = vmatmul.f32.gmra.mxu0 %v707
          %v790 = vpop.f32.mrf.mxu0
          %v791 = vadd.f32 %v726, %v790
          %792 = vdwg.mxu0
          %793 = vadd.xlane.f32.xlu0 %v746
          %v794 = vpop.xlane.xlu0 %793
          %795 = vadd.xlane.f32.xlu0 %v749
          %v796 = vpop.xlane.xlu0 %795
          %797 = vadd.xlane.f32.xlu0 %v752
          %v798 = vpop.xlane.xlu0 %797
          %799 = vadd.xlane.f32.xlu0 %v755
          %v800 = vpop.xlane.xlu0 %799
          %801 = vadd.xlane.f32.xlu0 %v758
          %v802 = vpop.xlane.xlu0 %801
          %803 = vadd.xlane.f32.xlu0 %v761
          %v804 = vpop.xlane.xlu0 %803
          %805 = vadd.xlane.f32.xlu0 %v764
          %v806 = vpop.xlane.xlu0 %805
          %807 = vadd.xlane.f32.xlu0 %v767
          %v808 = vpop.xlane.xlu0 %807
          %809 = vadd.xlane.f32.xlu0 %v770
          %v810 = vpop.xlane.xlu0 %809
          %811 = vadd.xlane.f32.xlu0 %v773
          %v812 = vpop.xlane.xlu0 %811
          %813 = vadd.xlane.f32.xlu0 %v776
          %v814 = vpop.xlane.xlu0 %813
          %815 = vadd.xlane.f32.xlu0 %v779
          %v816 = vpop.xlane.xlu0 %815
          %817 = vadd.xlane.f32.xlu0 %v782
          %v818 = vpop.xlane.xlu0 %817
          %819 = vadd.xlane.f32.xlu0 %v785
          %v820 = vpop.xlane.xlu0 %819
          %821 = vadd.xlane.f32.xlu0 %v788
          %v822 = vpop.xlane.xlu0 %821
          %823 = vadd.xlane.f32.xlu0 %v791
          %v824 = vpop.xlane.xlu0 %823
          %v825 = vrcp.pop 128.0
          %v826 = vmul.f32 128.0, %v825
          %v827 = vsub.f32 1.0, %v826
          %v828 = vmul.f32 %v825, %v827
          %v829 = vadd.f32 %v825, %v828
          %vm830 = vweird.f32 %v825
          %v831 = vsel %vm830, %v825, %v829
          %v832 = vmul.f32 %v794, %v831
          %v833 = vmul.f32 %v796, %v831
          %v834 = vmul.f32 %v798, %v831
          %v835 = vmul.f32 %v800, %v831
          %v836 = vmul.f32 %v802, %v831
          %v837 = vmul.f32 %v804, %v831
          %v838 = vmul.f32 %v806, %v831
          %v839 = vmul.f32 %v808, %v831
          %v840 = vmul.f32 %v810, %v831
          %v841 = vmul.f32 %v812, %v831
          %v842 = vmul.f32 %v814, %v831
          %v843 = vmul.f32 %v816, %v831
          %v844 = vmul.f32 %v818, %v831
          %v845 = vmul.f32 %v820, %v831
          %v846 = vmul.f32 %v822, %v831
          %v847 = vmul.f32 %v824, %v831
          %v848 = vsub.f32 %v746, %v832
          %v849 = vsub.f32 %v749, %v833
          %v850 = vsub.f32 %v752, %v834
          %v851 = vsub.f32 %v755, %v835
          %v852 = vsub.f32 %v758, %v836
          %v853 = vsub.f32 %v761, %v837
          %v854 = vsub.f32 %v764, %v838
          %v855 = vsub.f32 %v767, %v839
          %v856 = vsub.f32 %v770, %v840
          %v857 = vsub.f32 %v773, %v841
          %v858 = vsub.f32 %v776, %v842
          %v859 = vsub.f32 %v779, %v843
          %v860 = vsub.f32 %v782, %v844
          %v861 = vsub.f32 %v785, %v845
          %v862 = vsub.f32 %v788, %v846
          %v863 = vsub.f32 %v791, %v847
          %v864 = vmul.f32 %v848, %v848
          %v865 = vmul.f32 %v849, %v849
          %v866 = vmul.f32 %v850, %v850
          %v867 = vmul.f32 %v851, %v851
          %v868 = vmul.f32 %v852, %v852
          %v869 = vmul.f32 %v853, %v853
          %v870 = vmul.f32 %v854, %v854
          %v871 = vmul.f32 %v855, %v855
          %v872 = vmul.f32 %v856, %v856
          %v873 = vmul.f32 %v857, %v857
          %v874 = vmul.f32 %v858, %v858
          %v875 = vmul.f32 %v859, %v859
          %v876 = vmul.f32 %v860, %v860
          %v877 = vmul.f32 %v861, %v861
          %v878 = vmul.f32 %v862, %v862
          %v879 = vmul.f32 %v863, %v863
          %880 = vadd.xlane.f32.xlu0 %v864
          %v881 = vpop.xlane.xlu0 %880
          %882 = vadd.xlane.f32.xlu0 %v865
          %v883 = vpop.xlane.xlu0 %882
          %884 = vadd.xlane.f32.xlu0 %v866
          %v885 = vpop.xlane.xlu0 %884
          %886 = vadd.xlane.f32.xlu0 %v867
          %v887 = vpop.xlane.xlu0 %886
          %888 = vadd.xlane.f32.xlu0 %v868
          %v889 = vpop.xlane.xlu0 %888
          %890 = vadd.xlane.f32.xlu0 %v869
          %v891 = vpop.xlane.xlu0 %890
          %892 = vadd.xlane.f32.xlu0 %v870
          %v893 = vpop.xlane.xlu0 %892
          %894 = vadd.xlane.f32.xlu0 %v871
          %v895 = vpop.xlane.xlu0 %894
          %896 = vadd.xlane.f32.xlu0 %v872
          %v897 = vpop.xlane.xlu0 %896
          %898 = vadd.xlane.f32.xlu0 %v873
          %v899 = vpop.xlane.xlu0 %898
          %900 = vadd.xlane.f32.xlu0 %v874
          %v901 = vpop.xlane.xlu0 %900
          %902 = vadd.xlane.f32.xlu0 %v875
          %v903 = vpop.xlane.xlu0 %902
          %904 = vadd.xlane.f32.xlu0 %v876
          %v905 = vpop.xlane.xlu0 %904
          %906 = vadd.xlane.f32.xlu0 %v877
          %v907 = vpop.xlane.xlu0 %906
          %908 = vadd.xlane.f32.xlu0 %v878
          %v909 = vpop.xlane.xlu0 %908
          %910 = vadd.xlane.f32.xlu0 %v879
          %v911 = vpop.xlane.xlu0 %910
          %v912 = vmul.f32 %v881, %v831
          %v913 = vmul.f32 %v883, %v831
          %v914 = vmul.f32 %v885, %v831
          %v915 = vmul.f32 %v887, %v831
          %v916 = vmul.f32 %v889, %v831
          %v917 = vmul.f32 %v891, %v831
          %v918 = vmul.f32 %v893, %v831
          %v919 = vmul.f32 %v895, %v831
          %v920 = vmul.f32 %v897, %v831
          %v921 = vmul.f32 %v899, %v831
          %v922 = vmul.f32 %v901, %v831
          %v923 = vmul.f32 %v903, %v831
          %v924 = vmul.f32 %v905, %v831
          %v925 = vmul.f32 %v907, %v831
          %v926 = vmul.f32 %v909, %v831
          %v927 = vmul.f32 %v911, %v831
          %v928 = vadd.f32 %v912, 1e-05
          %v929 = vadd.f32 %v913, 1e-05
          %v930 = vadd.f32 %v914, 1e-05
          %v931 = vadd.f32 %v915, 1e-05
          %v932 = vadd.f32 %v916, 1e-05
          %v933 = vadd.f32 %v917, 1e-05
          %v934 = vadd.f32 %v918, 1e-05
          %v935 = vadd.f32 %v919, 1e-05
          %v936 = vadd.f32 %v920, 1e-05
          %v937 = vadd.f32 %v921, 1e-05
          %v938 = vadd.f32 %v922, 1e-05
          %v939 = vadd.f32 %v923, 1e-05
          %v940 = vadd.f32 %v924, 1e-05
          %v941 = vadd.f32 %v925, 1e-05
          %v942 = vadd.f32 %v926, 1e-05
          %v943 = vadd.f32 %v927, 1e-05
          %v944 = vrsqrt.pop %v928
          %v945 = vmul.f32 %v944, %v928
          %v946 = vmul.f32 %v945, %v944
          %v947 = vmul.f32 0.5, %v946
          %v948 = vsub.f32 1.5, %v947
          %v949 = vmul.f32 %v944, %v948
          %vm950 = vweird.f32 %v928
          %vm951 = vweird.f32 %v944
          %vm952 = vmor %vm950, %vm951
          %v953 = vsel %vm952, %v944, %v949
          %v954 = vrsqrt.pop %v929
          %v955 = vmul.f32 %v954, %v929
          %v956 = vmul.f32 %v955, %v954
          %v957 = vmul.f32 0.5, %v956
          %v958 = vsub.f32 1.5, %v957
          %v959 = vmul.f32 %v954, %v958
          %vm960 = vweird.f32 %v929
          %vm961 = vweird.f32 %v954
          %vm962 = vmor %vm960, %vm961
          %v963 = vsel %vm962, %v954, %v959
          %v964 = vrsqrt.pop %v930
          %v965 = vmul.f32 %v964, %v930
          %v966 = vmul.f32 %v965, %v964
          %v967 = vmul.f32 0.5, %v966
          %v968 = vsub.f32 1.5, %v967
          %v969 = vmul.f32 %v964, %v968
          %vm970 = vweird.f32 %v930
          %vm971 = vweird.f32 %v964
          %vm972 = vmor %vm970, %vm971
          %v973 = vsel %vm972, %v964, %v969
          %v974 = vrsqrt.pop %v931
          %v975 = vmul.f32 %v974, %v931
          %v976 = vmul.f32 %v975, %v974
          %v977 = vmul.f32 0.5, %v976
          %v978 = vsub.f32 1.5, %v977
          %v979 = vmul.f32 %v974, %v978
          %vm980 = vweird.f32 %v931
          %vm981 = vweird.f32 %v974
          %vm982 = vmor %vm980, %vm981
          %v983 = vsel %vm982, %v974, %v979
          %v984 = vrsqrt.pop %v932
          %v985 = vmul.f32 %v984, %v932
          %v986 = vmul.f32 %v985, %v984
          %v987 = vmul.f32 0.5, %v986
          %v988 = vsub.f32 1.5, %v987
          %v989 = vmul.f32 %v984, %v988
          %vm990 = vweird.f32 %v932
          %vm991 = vweird.f32 %v984
          %vm992 = vmor %vm990, %vm991
          %v993 = vsel %vm992, %v984, %v989
          %v994 = vrsqrt.pop %v933
          %v995 = vmul.f32 %v994, %v933
          %v996 = vmul.f32 %v995, %v994
          %v997 = vmul.f32 0.5, %v996
          %v998 = vsub.f32 1.5, %v997
          %v999 = vmul.f32 %v994, %v998
          %vm1000 = vweird.f32 %v933
          %vm1001 = vweird.f32 %v994
          %vm1002 = vmor %vm1000, %vm1001
          %v1003 = vsel %vm1002, %v994, %v999
          %v1004 = vrsqrt.pop %v934
          %v1005 = vmul.f32 %v1004, %v934
          %v1006 = vmul.f32 %v1005, %v1004
          %v1007 = vmul.f32 0.5, %v1006
          %v1008 = vsub.f32 1.5, %v1007
          %v1009 = vmul.f32 %v1004, %v1008
          %vm1010 = vweird.f32 %v934
          %vm1011 = vweird.f32 %v1004
          %vm1012 = vmor %vm1010, %vm1011
          %v1013 = vsel %vm1012, %v1004, %v1009
          %v1014 = vrsqrt.pop %v935
          %v1015 = vmul.f32 %v1014, %v935
          %v1016 = vmul.f32 %v1015, %v1014
          %v1017 = vmul.f32 0.5, %v1016
          %v1018 = vsub.f32 1.5, %v1017
          %v1019 = vmul.f32 %v1014, %v1018
          %vm1020 = vweird.f32 %v935
          %vm1021 = vweird.f32 %v1014
          %vm1022 = vmor %vm1020, %vm1021
          %v1023 = vsel %vm1022, %v1014, %v1019
          %v1024 = vrsqrt.pop %v936
          %v1025 = vmul.f32 %v1024, %v936
          %v1026 = vmul.f32 %v1025, %v1024
          %v1027 = vmul.f32 0.5, %v1026
          %v1028 = vsub.f32 1.5, %v1027
          %v1029 = vmul.f32 %v1024, %v1028
          %vm1030 = vweird.f32 %v936
          %vm1031 = vweird.f32 %v1024
          %vm1032 = vmor %vm1030, %vm1031
          %v1033 = vsel %vm1032, %v1024, %v1029
          %v1034 = vrsqrt.pop %v937
          %v1035 = vmul.f32 %v1034, %v937
          %v1036 = vmul.f32 %v1035, %v1034
          %v1037 = vmul.f32 0.5, %v1036
          %v1038 = vsub.f32 1.5, %v1037
          %v1039 = vmul.f32 %v1034, %v1038
          %vm1040 = vweird.f32 %v937
          %vm1041 = vweird.f32 %v1034
          %vm1042 = vmor %vm1040, %vm1041
          %v1043 = vsel %vm1042, %v1034, %v1039
          %v1044 = vrsqrt.pop %v938
          %v1045 = vmul.f32 %v1044, %v938
          %v1046 = vmul.f32 %v1045, %v1044
          %v1047 = vmul.f32 0.5, %v1046
          %v1048 = vsub.f32 1.5, %v1047
          %v1049 = vmul.f32 %v1044, %v1048
          %vm1050 = vweird.f32 %v938
          %vm1051 = vweird.f32 %v1044
          %vm1052 = vmor %vm1050, %vm1051
          %v1053 = vsel %vm1052, %v1044, %v1049
          %v1054 = vrsqrt.pop %v939
          %v1055 = vmul.f32 %v1054, %v939
          %v1056 = vmul.f32 %v1055, %v1054
          %v1057 = vmul.f32 0.5, %v1056
          %v1058 = vsub.f32 1.5, %v1057
          %v1059 = vmul.f32 %v1054, %v1058
          %vm1060 = vweird.f32 %v939
          %vm1061 = vweird.f32 %v1054
          %vm1062 = vmor %vm1060, %vm1061
          %v1063 = vsel %vm1062, %v1054, %v1059
          %v1064 = vrsqrt.pop %v940
          %v1065 = vmul.f32 %v1064, %v940
          %v1066 = vmul.f32 %v1065, %v1064
          %v1067 = vmul.f32 0.5, %v1066
          %v1068 = vsub.f32 1.5, %v1067
          %v1069 = vmul.f32 %v1064, %v1068
          %vm1070 = vweird.f32 %v940
          %vm1071 = vweird.f32 %v1064
          %vm1072 = vmor %vm1070, %vm1071
          %v1073 = vsel %vm1072, %v1064, %v1069
          %v1074 = vrsqrt.pop %v941
          %v1075 = vmul.f32 %v1074, %v941
          %v1076 = vmul.f32 %v1075, %v1074
          %v1077 = vmul.f32 0.5, %v1076
          %v1078 = vsub.f32 1.5, %v1077
          %v1079 = vmul.f32 %v1074, %v1078
          %vm1080 = vweird.f32 %v941
          %vm1081 = vweird.f32 %v1074
          %vm1082 = vmor %vm1080, %vm1081
          %v1083 = vsel %vm1082, %v1074, %v1079
          %v1084 = vrsqrt.pop %v942
          %v1085 = vmul.f32 %v1084, %v942
          %v1086 = vmul.f32 %v1085, %v1084
          %v1087 = vmul.f32 0.5, %v1086
          %v1088 = vsub.f32 1.5, %v1087
          %v1089 = vmul.f32 %v1084, %v1088
          %vm1090 = vweird.f32 %v942
          %vm1091 = vweird.f32 %v1084
          %vm1092 = vmor %vm1090, %vm1091
          %v1093 = vsel %vm1092, %v1084, %v1089
          %v1094 = vrsqrt.pop %v943
          %v1095 = vmul.f32 %v1094, %v943
          %v1096 = vmul.f32 %v1095, %v1094
          %v1097 = vmul.f32 0.5, %v1096
          %v1098 = vsub.f32 1.5, %v1097
          %v1099 = vmul.f32 %v1094, %v1098
          %vm1100 = vweird.f32 %v943
          %vm1101 = vweird.f32 %v1094
          %vm1102 = vmor %vm1100, %vm1101
          %v1103 = vsel %vm1102, %v1094, %v1099
          %v1104 = vmul.f32 %v848, %v953
          %v1105 = vmul.f32 %v849, %v963
          %v1106 = vmul.f32 %v850, %v973
          %v1107 = vmul.f32 %v851, %v983
          %v1108 = vmul.f32 %v852, %v993
          %v1109 = vmul.f32 %v853, %v1003
          %v1110 = vmul.f32 %v854, %v1013
          %v1111 = vmul.f32 %v855, %v1023
          %v1112 = vmul.f32 %v856, %v1033
          %v1113 = vmul.f32 %v857, %v1043
          %v1114 = vmul.f32 %v858, %v1053
          %v1115 = vmul.f32 %v859, %v1063
          %v1116 = vmul.f32 %v860, %v1073
          %v1117 = vmul.f32 %v861, %v1083
          %v1118 = vmul.f32 %v862, %v1093
          %v1119 = vmul.f32 %v863, %v1103
          %v1120 = vld [vmem:[%s5] sm:$0x1]
          %v1122 = vperm.slane %v1120, 0
          %v1124 = vmul.f32 %v1104, %v1122
          %v1125 = vmul.f32 %v1105, %v1122
          %v1126 = vmul.f32 %v1106, %v1122
          %v1127 = vmul.f32 %v1107, %v1122
          %v1128 = vmul.f32 %v1108, %v1122
          %v1129 = vmul.f32 %v1109, %v1122
          %v1130 = vmul.f32 %v1110, %v1122
          %v1131 = vmul.f32 %v1111, %v1122
          %v1132 = vmul.f32 %v1112, %v1122
          %v1133 = vmul.f32 %v1113, %v1122
          %v1134 = vmul.f32 %v1114, %v1122
          %v1135 = vmul.f32 %v1115, %v1122
          %v1136 = vmul.f32 %v1116, %v1122
          %v1137 = vmul.f32 %v1117, %v1122
          %v1138 = vmul.f32 %v1118, %v1122
          %v1139 = vmul.f32 %v1119, %v1122
          %v1140 = vld [vmem:[%s6] sm:$0x1]
          %v1142 = vperm.slane %v1140, 0
          %v1144 = vadd.f32 %v1124, %v1142
          %v1145 = vadd.f32 %v1125, %v1142
          %v1146 = vadd.f32 %v1126, %v1142
          %v1147 = vadd.f32 %v1127, %v1142
          %v1148 = vadd.f32 %v1128, %v1142
          %v1149 = vadd.f32 %v1129, %v1142
          %v1150 = vadd.f32 %v1130, %v1142
          %v1151 = vadd.f32 %v1131, %v1142
          %v1152 = vadd.f32 %v1132, %v1142
          %v1153 = vadd.f32 %v1133, %v1142
          %v1154 = vadd.f32 %v1134, %v1142
          %v1155 = vadd.f32 %v1135, %v1142
          %v1156 = vadd.f32 %v1136, %v1142
          %v1157 = vadd.f32 %v1137, %v1142
          %v1158 = vadd.f32 %v1138, %v1142
          %v1159 = vadd.f32 %v1139, %v1142
          %v1160 = vmax.f32 %v1144, 0.0
          %v1161 = vmax.f32 %v1145, 0.0
          %v1162 = vmax.f32 %v1146, 0.0
          %v1163 = vmax.f32 %v1147, 0.0
          %v1164 = vmax.f32 %v1148, 0.0
          %v1165 = vmax.f32 %v1149, 0.0
          %v1166 = vmax.f32 %v1150, 0.0
          %v1167 = vmax.f32 %v1151, 0.0
          %v1168 = vmax.f32 %v1152, 0.0
          %v1169 = vmax.f32 %v1153, 0.0
          %v1170 = vmax.f32 %v1154, 0.0
          %v1171 = vmax.f32 %v1155, 0.0
          %v1172 = vmax.f32 %v1156, 0.0
          %v1173 = vmax.f32 %v1157, 0.0
          %v1174 = vmax.f32 %v1158, 0.0
          %v1175 = vmax.f32 %v1159, 0.0
          %v1176 = vld [vmem:[%s440] sm:$0xff]
          %v1177 = vld [vmem:[%s440 + $0x8] sm:$0xff]
          %v1178 = vld [vmem:[%s440 + $0x10] sm:$0xff]
          %v1179 = vld [vmem:[%s440 + $0x18] sm:$0xff]
          %v1180 = vld [vmem:[%s440 + $0x20] sm:$0xff]
          %v1181 = vld [vmem:[%s440 + $0x28] sm:$0xff]
          %v1182 = vld [vmem:[%s440 + $0x30] sm:$0xff]
          %v1183 = vld [vmem:[%s440 + $0x38] sm:$0xff]
          %v1184 = vld [vmem:[%s440 + $0x40] sm:$0xff]
          %v1185 = vld [vmem:[%s440 + $0x48] sm:$0xff]
          %v1186 = vld [vmem:[%s440 + $0x50] sm:$0xff]
          %v1187 = vld [vmem:[%s440 + $0x58] sm:$0xff]
          %v1188 = vld [vmem:[%s440 + $0x60] sm:$0xff]
          %v1189 = vld [vmem:[%s440 + $0x68] sm:$0xff]
          %v1190 = vld [vmem:[%s440 + $0x70] sm:$0xff]
          %v1191 = vld [vmem:[%s440 + $0x78] sm:$0xff]
          %v1192 = vadd.f32 %v1160, %v1176
          %v1193 = vadd.f32 %v1161, %v1177
          %v1194 = vadd.f32 %v1162, %v1178
          %v1195 = vadd.f32 %v1163, %v1179
          %v1196 = vadd.f32 %v1164, %v1180
          %v1197 = vadd.f32 %v1165, %v1181
          %v1198 = vadd.f32 %v1166, %v1182
          %v1199 = vadd.f32 %v1167, %v1183
          %v1200 = vadd.f32 %v1168, %v1184
          %v1201 = vadd.f32 %v1169, %v1185
          %v1202 = vadd.f32 %v1170, %v1186
          %v1203 = vadd.f32 %v1171, %v1187
          %v1204 = vadd.f32 %v1172, %v1188
          %v1205 = vadd.f32 %v1173, %v1189
          %v1206 = vadd.f32 %v1174, %v1190
          %v1207 = vadd.f32 %v1175, %v1191
          %1208 = vst [vmem:[%s428] sm:$0xff] %v1192
          %1209 = vst [vmem:[%s428 + $0x8] sm:$0xff] %v1193
          %1210 = vst [vmem:[%s428 + $0x10] sm:$0xff] %v1194
          %1211 = vst [vmem:[%s428 + $0x18] sm:$0xff] %v1195
          %1212 = vst [vmem:[%s428 + $0x20] sm:$0xff] %v1196
          %1213 = vst [vmem:[%s428 + $0x28] sm:$0xff] %v1197
          %1214 = vst [vmem:[%s428 + $0x30] sm:$0xff] %v1198
          %1215 = vst [vmem:[%s428 + $0x38] sm:$0xff] %v1199
          %1216 = vst [vmem:[%s428 + $0x40] sm:$0xff] %v1200
          %1217 = vst [vmem:[%s428 + $0x48] sm:$0xff] %v1201
          %1218 = vst [vmem:[%s428 + $0x50] sm:$0xff] %v1202
          %1219 = vst [vmem:[%s428 + $0x58] sm:$0xff] %v1203
          %1220 = vst [vmem:[%s428 + $0x60] sm:$0xff] %v1204
          %1221 = vst [vmem:[%s428 + $0x68] sm:$0xff] %v1205
          %1222 = vst [vmem:[%s428 + $0x70] sm:$0xff] %v1206
          %1223 = vst [vmem:[%s428 + $0x78] sm:$0xff] %v1207
        $region97: #{_lambda_.3} parent=84 // pred_fallthru
          _
        %s1224 = sand.u32 %s205, 1
        %s1225 = scalar_lea.sflag [#allocation5], %s1224
        %s1226 = sand.u32 %s205, 1
        %s1227 = smul.addr %s1226, 128
        %s1228 = scalar_lea.vmem [#allocation4], %s1227
        // Predicated region
        $region98: #{_lambda_.3} parent=84 // pred_check
          %p1229 = pneg %p215
        $region99: #{_lambda_.3} parent=84 // pred_check_branch
          %1231 = sbr.rel (%p1229) target = $region101
        $region100: #{_lambda_.3} parent=84 // pred_region
          %s1232 = smul.u32 16, %s25
          %1234 = vsyncadd %s1225, 0
          %s1235 = smul.addr %s1232, 8
          %s1236 = scalar_lea.hbm %s7, %s1235
          %s1237 = sshll.u32 %s1228, 4
          %s1238 = int_to_ptr.vmem [resolvable:$true] %s1237
          %s1239 = sshll.u32 %s1236, 4
          %s1240 = int_to_ptr.hbm [resolvable:$true] %s1239
          %1245 = dma.vmem_to_hbm [thread:$0]  %s1238, 2048, %s1240, %s1225, 128, 128, 8
        $region101: #{_lambda_.3} parent=84 // pred_fallthru
          _
      $region85: #{_lambda_.3} parent=5 // pred_fallthru
        _
      %p1246 = scmp.le.s32.totalorder 2, %s16
      // Predicated region
      $region102: #{_lambda_.3} parent=5 // pred_check
        %p1247 = pneg %p1246
      $region103: #{_lambda_.3} parent=5 // pred_check_branch
        %1249 = sbr.rel (%p1247) target = $region105
      $region104: #{_lambda_.3} parent=5 // pred_region
        %s1250 = ssub.s32 %s16, 2
        // Predicated region
        $region106: #{_lambda_.3} parent=104 // pred_check
          %p1251 = pneg %p221
        $region107: #{_lambda_.3} parent=104 // pred_check_branch
          %1253 = sbr.rel (%p1251) target = $region109
        $region108: #{_lambda_.3} parent=104 // pred_region
          %s1254 = sand.u32 %s206, 1
          %s1255 = scalar_lea.sflag [#allocation5], %s1254
          %s1256 = sand.u32 %s206, 1
          %s1257 = smul.addr %s1256, 128
          %s1258 = scalar_lea.vmem [#allocation4], %s1257
          %1260 = dma.done %s1255, 2048
        $region109: #{_lambda_.3} parent=104 // pred_fallthru
          _
      $region105: #{_lambda_.3} parent=5 // pred_fallthru
        _
    $region6: #{_lambda_.3} parent=1 // loop_footer
      %s20 = sadd.s32 1, %s16
    $region7: #{_lambda_.3} parent=1 // loop_footer_branch
      %15 = sbr.rel target = $region3
    $region8: #{_lambda_.3} parent=1 // loop_exit
      _
    %1261 = vsyncpa [#allocation5], 1
    %s1262 = scalar_lea.sflag [#allocation5], 1
    %1263 = vsyncpa %s1262, 1

// kernel: _lambda_.2
$region0: #{_lambda_.2}
  #allocation0 [shape = 'u32[]', space=smem, size = 0x4, offset = 0x4, fixed_abs, tag = 'smem constant byte address 0x4 - core index']
  #allocation1 [shape = 'u32[72,128]{1,0:T(1,128)}', space=vmem, size = 0x9000, scoped, tag = 'internal scratch']
  #allocation2 [shape = 'f32[128,128]{1,0:T(8,128)}', space=vmem, size = 0x10000, scoped, tag = 'scratch operand']
  %s0 = inlined_call_operand.vmem [shape: bf16[256,256], index: 0, kind: input, shape index: {}]
  %s1 = inlined_call_operand.vmem [shape: bf16[256,128], index: 1, kind: input, shape index: {}]
  %s2 = inlined_call_operand.vmem [shape: f32[128,128], index: 2, kind: input, shape index: {}]
  %s3 = inlined_call_operand.vmem [shape: f32[1,128], index: 3, kind: input, shape index: {}, may-alias: {3,5}]
  %s4 = inlined_call_operand.vmem [shape: f32[1,128], index: 4, kind: input, shape index: {}]
  %s5 = inlined_call_operand.vmem [shape: f32[1,128], index: 5, kind: input, shape index: {}, may-alias: {3,5}]
  %s6 = inlined_call_operand.vmem [shape: bf16[256,128], index: 6, kind: output, shape index: {}]
  %s7 = sld [smem:[#allocation0]]
  $region106: #{_lambda_.2} parent=0
    _
  %s9 = ssub.s32 1, %s7
  %s10 = scalar_select 0, %s9, %s7
  $region1: #{_lambda_.2} parent=0
    #allocation3 [shape = 'u8[65536]{0}', space=vmem, size = 0x10000, scoped, tag = 'input window, operand 0']
    loop: start=0, step=1, limit=6
    $region2: #{_lambda_.2} parent=1 // loop_pre_header
      _
    $region3: #{_lambda_.2} parent=1 // loop_header
      %s12 = sphi 0, %s16
      %p13 = scmp.ge.s32.totalorder %s12, 6
      %s19 = sphi 0, %s31
      %s20 = sphi 0, %s27
      %s21 = sphi 0, %s19
      %s22 = sphi 0, %s20
      %s23 = sphi 0, %s21
      %s24 = sphi 0, %s22
      %s36 = sphi 0, %s38
      %s39 = sphi 0, %s36
      %s40 = sphi 0, %s39
      %s56 = sphi 0, %s40
      %s62 = sphi 0, %s64
      %s65 = sphi 0, %s62
      %s66 = sphi 0, %s65
      %s82 = sphi 0, %s66
      %s86 = sphi 0, %s86
      %s88 = sphi 0, %s86
      %s89 = sphi 0, %s88
      %s103 = sphi 0, %s89
      %s107 = sphi 0, %s107
      %s109 = sphi 0, %s107
      %s110 = sphi 0, %s109
      %s124 = sphi 0, %s110
      %s128 = sphi 0, %s128
      %s130 = sphi 0, %s128
      %s131 = sphi 0, %s130
      %s145 = sphi 0, %s131
      %s149 = sphi 0, %s149
      %s151 = sphi 0, %s149
      %s152 = sphi 0, %s151
      %s166 = sphi 0, %s152
      %s172 = sphi 0, %s174
      %s175 = sphi 0, %s172
      %s176 = sphi 0, %s175
      %s192 = sphi 0, %s176
    $region4: #{_lambda_.2} parent=1 // loop_header_branch
      %15 = sbr.rel (%p13) target = $region8
    $region5: #{_lambda_.2} parent=1 // loop_body
      %s17 = ssub.s32 %s12, 1
      %s18 = ssub.s32 %s12, 2
      %s25 = sadd.s32 1, %s20
      %p26 = scmp.ge.s32.totalorder %s25, 2
      %s27 = scalar_select %p26, 0, %s25
      %s28 = sadd.s32 1, %s19
      %s29 = scalar_select %p26, %s28, %s19
      %p30 = scmp.ge.s32.totalorder %s29, 2
      %s31 = scalar_select %p30, 0, %s29
      %s32 = ssub.s32 %s19, %s31
      %s33 = ssub.s32 %s20, %s27
      %s34 = sor.u32 %s32, %s33
      %p35 = scmp.eq.s32.totalorder %s34, 0
      %s37 = sadd.s32 %s36, 1
      %s38 = scalar_select %p35, %s36, %s37
      %p41 = pneg %p35
      %p42 = scmp.eq.s32.totalorder %s12, 3
      %p43 = por %p41, %p42
      %p44 = scmp.ne.s32.totalorder %s36, %s39
      %p45 = scmp.eq.s32.totalorder %s12, 0
      %p46 = por %p44, %p45
      %p47 = scmp.ne.s32.totalorder %s36, %s39
      %p48 = scmp.eq.s32.totalorder %s17, 3
      %p49 = por %p47, %p48
      %p50 = scmp.ne.s32.totalorder %s39, %s40
      %p51 = scmp.eq.s32.totalorder %s17, 0
      %p52 = por %p50, %p51
      %p53 = scmp.ne.s32.totalorder %s39, %s40
      %p54 = scmp.eq.s32.totalorder %s18, 3
      %p55 = por %p53, %p54
      %p57 = scmp.ne.s32.totalorder %s40, %s56
      %p58 = scmp.eq.s32.totalorder %s18, 0
      %p59 = por %p57, %p58
      %s60 = ssub.s32 %s20, %s27
      %p61 = scmp.eq.s32.totalorder %s60, 0
      %s63 = sadd.s32 %s62, 1
      %s64 = scalar_select %p61, %s62, %s63
      %p67 = pneg %p61
      %p68 = scmp.eq.s32.totalorder %s12, 3
      %p69 = por %p67, %p68
      %p70 = scmp.ne.s32.totalorder %s62, %s65
      %p71 = scmp.eq.s32.totalorder %s12, 0
      %p72 = por %p70, %p71
      %p73 = scmp.ne.s32.totalorder %s62, %s65
      %p74 = scmp.eq.s32.totalorder %s17, 3
      %p75 = por %p73, %p74
      %p76 = scmp.ne.s32.totalorder %s65, %s66
      %p77 = scmp.eq.s32.totalorder %s17, 0
      %p78 = por %p76, %p77
      %p79 = scmp.ne.s32.totalorder %s65, %s66
      %p80 = scmp.eq.s32.totalorder %s18, 3
      %p81 = por %p79, %p80
      %p83 = scmp.ne.s32.totalorder %s66, %s82
      %p84 = scmp.eq.s32.totalorder %s18, 0
      %p85 = por %p83, %p84
      %s87 = sadd.s32 %s86, 1
      %p90 = scmp.eq.s32.totalorder %s12, 3
      %p91 = scmp.ne.s32.totalorder %s86, %s88
      %p92 = scmp.eq.s32.totalorder %s12, 0
      %p93 = por %p91, %p92
      %p94 = scmp.ne.s32.totalorder %s86, %s88
      %p95 = scmp.eq.s32.totalorder %s17, 3
      %p96 = por %p94, %p95
      %p97 = scmp.ne.s32.totalorder %s88, %s89
      %p98 = scmp.eq.s32.totalorder %s17, 0
      %p99 = por %p97, %p98
      %p100 = scmp.ne.s32.totalorder %s88, %s89
      %p101 = scmp.eq.s32.totalorder %s18, 3
      %p102 = por %p100, %p101
      %p104 = scmp.ne.s32.totalorder %s89, %s103
      %p105 = scmp.eq.s32.totalorder %s18, 0
      %p106 = por %p104, %p105
      %s108 = sadd.s32 %s107, 1
      %p111 = scmp.eq.s32.totalorder %s12, 3
      %p112 = scmp.ne.s32.totalorder %s107, %s109
      %p113 = scmp.eq.s32.totalorder %s12, 0
      %p114 = por %p112, %p113
      %p115 = scmp.ne.s32.totalorder %s107, %s109
      %p116 = scmp.eq.s32.totalorder %s17, 3
      %p117 = por %p115, %p116
      %p118 = scmp.ne.s32.totalorder %s109, %s110
      %p119 = scmp.eq.s32.totalorder %s17, 0
      %p120 = por %p118, %p119
      %p121 = scmp.ne.s32.totalorder %s109, %s110
      %p122 = scmp.eq.s32.totalorder %s18, 3
      %p123 = por %p121, %p122
      %p125 = scmp.ne.s32.totalorder %s110, %s124
      %p126 = scmp.eq.s32.totalorder %s18, 0
      %p127 = por %p125, %p126
      %s129 = sadd.s32 %s128, 1
      %p132 = scmp.eq.s32.totalorder %s12, 3
      %p133 = scmp.ne.s32.totalorder %s128, %s130
      %p134 = scmp.eq.s32.totalorder %s12, 0
      %p135 = por %p133, %p134
      %p136 = scmp.ne.s32.totalorder %s128, %s130
      %p137 = scmp.eq.s32.totalorder %s17, 3
      %p138 = por %p136, %p137
      %p139 = scmp.ne.s32.totalorder %s130, %s131
      %p140 = scmp.eq.s32.totalorder %s17, 0
      %p141 = por %p139, %p140
      %p142 = scmp.ne.s32.totalorder %s130, %s131
      %p143 = scmp.eq.s32.totalorder %s18, 3
      %p144 = por %p142, %p143
      %p146 = scmp.ne.s32.totalorder %s131, %s145
      %p147 = scmp.eq.s32.totalorder %s18, 0
      %p148 = por %p146, %p147
      %s150 = sadd.s32 %s149, 1
      %p153 = scmp.eq.s32.totalorder %s12, 3
      %p154 = scmp.ne.s32.totalorder %s149, %s151
      %p155 = scmp.eq.s32.totalorder %s12, 0
      %p156 = por %p154, %p155
      %p157 = scmp.ne.s32.totalorder %s149, %s151
      %p158 = scmp.eq.s32.totalorder %s17, 3
      %p159 = por %p157, %p158
      %p160 = scmp.ne.s32.totalorder %s151, %s152
      %p161 = scmp.eq.s32.totalorder %s17, 0
      %p162 = por %p160, %p161
      %p163 = scmp.ne.s32.totalorder %s151, %s152
      %p164 = scmp.eq.s32.totalorder %s18, 3
      %p165 = por %p163, %p164
      %p167 = scmp.ne.s32.totalorder %s152, %s166
      %p168 = scmp.eq.s32.totalorder %s18, 0
      %p169 = por %p167, %p168
      %s170 = ssub.s32 %s19, %s31
      %p171 = scmp.eq.s32.totalorder %s170, 0
      %s173 = sadd.s32 %s172, 1
      %s174 = scalar_select %p171, %s172, %s173
      %p177 = pneg %p171
      %p178 = scmp.eq.s32.totalorder %s12, 3
      %p179 = por %p177, %p178
      %p180 = scmp.ne.s32.totalorder %s172, %s175
      %p181 = scmp.eq.s32.totalorder %s12, 0
      %p182 = por %p180, %p181
      %p183 = scmp.ne.s32.totalorder %s172, %s175
      %p184 = scmp.eq.s32.totalorder %s17, 3
      %p185 = por %p183, %p184
      %p186 = scmp.ne.s32.totalorder %s175, %s176
      %p187 = scmp.eq.s32.totalorder %s17, 0
      %p188 = por %p186, %p187
      %p189 = scmp.ne.s32.totalorder %s175, %s176
      %p190 = scmp.eq.s32.totalorder %s18, 3
      %p191 = por %p189, %p190
      %p193 = scmp.ne.s32.totalorder %s176, %s192
      %p194 = scmp.eq.s32.totalorder %s18, 0
      %p195 = por %p193, %p194
      %p196 = scmp.le.s32.totalorder 1, %s12
      %p197 = scmp.lt.s32.totalorder %s12, 5
      %p198 = pnand %p196, %p197
      %p199 = pneg %p198
      // Predicated region
      $region9: #{_lambda_.2} parent=5 // pred_check
        _
      $region10: #{_lambda_.2} parent=5 // pred_check_branch
        %201 = sbr.rel (%p198) target = $region12
      $region11: #{_lambda_.2} parent=5 // pred_region
        %s202 = ssub.s32 %s12, 1
        // Predicated region
        $region13: #{_lambda_.2} parent=11 // pred_check
          %p203 = pneg %p99
        $region14: #{_lambda_.2} parent=11 // pred_check_branch
          %205 = sbr.rel (%p203) target = $region16
        $region15: #{_lambda_.2} parent=11 // pred_region
          _
        $region16: #{_lambda_.2} parent=11 // pred_fallthru
          _
        // Predicated region
        $region17: #{_lambda_.2} parent=11 // pred_check
          %p206 = pneg %p120
        $region18: #{_lambda_.2} parent=11 // pred_check_branch
          %208 = sbr.rel (%p206) target = $region20
        $region19: #{_lambda_.2} parent=11 // pred_region
          _
        $region20: #{_lambda_.2} parent=11 // pred_fallthru
          _
        // Predicated region
        $region21: #{_lambda_.2} parent=11 // pred_check
          %p209 = pneg %p141
        $region22: #{_lambda_.2} parent=11 // pred_check_branch
          %211 = sbr.rel (%p209) target = $region24
        $region23: #{_lambda_.2} parent=11 // pred_region
          _
        $region24: #{_lambda_.2} parent=11 // pred_fallthru
          _
        // Predicated region
        $region25: #{_lambda_.2} parent=11 // pred_check
          %p212 = pneg %p162
        $region26: #{_lambda_.2} parent=11 // pred_check_branch
          %214 = sbr.rel (%p212) target = $region28
        $region27: #{_lambda_.2} parent=11 // pred_region
          _
        $region28: #{_lambda_.2} parent=11 // pred_fallthru
          _
      $region12: #{_lambda_.2} parent=5 // pred_fallthru
        _
      %p215 = scmp.lt.s32.totalorder %s12, 4
      // Predicated region
      $region29: #{_lambda_.2} parent=5 // pred_check
        %p216 = pneg %p215
      $region30: #{_lambda_.2} parent=5 // pred_check_branch
        %218 = sbr.rel (%p216) target = $region32
      $region31: #{_lambda_.2} parent=5 // pred_region
        // Predicated region
        $region33: #{_lambda_.2} parent=31 // pred_check
          %p219 = pneg %p46
        $region34: #{_lambda_.2} parent=31 // pred_check_branch
          %221 = sbr.rel (%p219) target = $region36
        $region35: #{_lambda_.2} parent=31 // pred_region
          %s222 = sand.u32 %s36, 1
          %s223 = sand.u32 %s36, 1
          %s224 = smul.addr %s223, 64
          %s225 = scalar_lea.vmem [#allocation3], %s224
          %s226 = smul.u32 16, %s19
          %s227 = smul.addr %s226, 2
          %s228 = sadd.s32 %s20, %s227
          %s229 = smul.addr %s228, 4
          %s230 = scalar_lea.vmem %s0, %s229
          // Predicated region
          $region37: #{_lambda_.2} parent=35 // pred_check
            _
          $region38: #{_lambda_.2} parent=35 // pred_check_branch
            %232 = sbr.rel (0) target = $region40
          $region39: #{_lambda_.2} parent=35 // pred_region
            // Predicated region
            $region41: #{_lambda_.2} parent=39 // pred_check
              _
            $region42: #{_lambda_.2} parent=39 // pred_check_branch
              %234 = sbr.rel target = $region44
            $region43: #{_lambda_.2} parent=39 // pred_region
              // Predicated region
              $region56: #{_lambda_.2} parent=43 // pred_check
                _
              $region57: #{_lambda_.2} parent=43 // pred_check_branch
                %280 = sbr.rel (0) target = $region59
              $region58: #{_lambda_.2} parent=43 // pred_region
                loop: start=0, step=1, limit=1
                $region60: #{_lambda_.2} parent=58 // loop_pre_header
                  _
                $region61: #{_lambda_.2} parent=58 // loop_header
                  %s282 = sphi 0, %s286
                  %p283 = scmp.ge.s32.totalorder %s282, 1
                  %s287 = sphi %s230, %s230
                  %s288 = sphi %s225, %s225
                $region62: #{_lambda_.2} parent=58 // loop_header_branch
                  %285 = sbr.rel (%p283) target = $region66
                $region63: #{_lambda_.2} parent=58 // loop_body
                  _
                $region64: #{_lambda_.2} parent=58 // loop_footer
                  %s286 = sadd.s32 1, %s282
                $region65: #{_lambda_.2} parent=58 // loop_footer_branch
                  %281 = sbr.rel target = $region61
                $region66: #{_lambda_.2} parent=58 // loop_exit
                  _
                %s290 = ssub.s32 16, 1
                loop: start=0, step=1, limit=1
                $region67: #{_lambda_.2} parent=58 // loop_pre_header
                  _
                $region68: #{_lambda_.2} parent=58 // loop_header
                  %s292 = sphi 0, %s296
                  %p293 = scmp.ge.s32.totalorder %s292, 1
                  %s297 = sphi %s230, %s230
                  %s298 = sphi %s225, %s225
                $region69: #{_lambda_.2} parent=58 // loop_header_branch
                  %295 = sbr.rel (%p293) target = $region73
                $region70: #{_lambda_.2} parent=58 // loop_body
                  %v299 = vld [vmem:[%s297] sm:%s290]
                  %300 = vst [vmem:[%s298] sm:%s290] %v299
                  %v301 = vld [vmem:[%s297 + $0x8] sm:%s290]
                  %302 = vst [vmem:[%s298 + $0x4] sm:%s290] %v301
                  %v303 = vld [vmem:[%s297 + $0x10] sm:%s290]
                  %304 = vst [vmem:[%s298 + $0x8] sm:%s290] %v303
                  %v305 = vld [vmem:[%s297 + $0x18] sm:%s290]
                  %306 = vst [vmem:[%s298 + $0xc] sm:%s290] %v305
                  %v307 = vld [vmem:[%s297 + $0x20] sm:%s290]
                  %308 = vst [vmem:[%s298 + $0x10] sm:%s290] %v307
                  %v309 = vld [vmem:[%s297 + $0x28] sm:%s290]
                  %310 = vst [vmem:[%s298 + $0x14] sm:%s290] %v309
                  %v311 = vld [vmem:[%s297 + $0x30] sm:%s290]
                  %312 = vst [vmem:[%s298 + $0x18] sm:%s290] %v311
                  %v313 = vld [vmem:[%s297 + $0x38] sm:%s290]
                  %314 = vst [vmem:[%s298 + $0x1c] sm:%s290] %v313
                  %v315 = vld [vmem:[%s297 + $0x40] sm:%s290]
                  %316 = vst [vmem:[%s298 + $0x20] sm:%s290] %v315
                  %v317 = vld [vmem:[%s297 + $0x48] sm:%s290]
                  %318 = vst [vmem:[%s298 + $0x24] sm:%s290] %v317
                  %v319 = vld [vmem:[%s297 + $0x50] sm:%s290]
                  %320 = vst [vmem:[%s298 + $0x28] sm:%s290] %v319
                  %v321 = vld [vmem:[%s297 + $0x58] sm:%s290]
                  %322 = vst [vmem:[%s298 + $0x2c] sm:%s290] %v321
                  %v323 = vld [vmem:[%s297 + $0x60] sm:%s290]
                  %324 = vst [vmem:[%s298 + $0x30] sm:%s290] %v323
                  %v325 = vld [vmem:[%s297 + $0x68] sm:%s290]
                  %326 = vst [vmem:[%s298 + $0x34] sm:%s290] %v325
                  %v327 = vld [vmem:[%s297 + $0x70] sm:%s290]
                  %328 = vst [vmem:[%s298 + $0x38] sm:%s290] %v327
                  %v329 = vld [vmem:[%s297 + $0x78] sm:%s290]
                  %330 = vst [vmem:[%s298 + $0x3c] sm:%s290] %v329
                $region71: #{_lambda_.2} parent=58 // loop_footer
                  %s296 = sadd.s32 1, %s292
                $region72: #{_lambda_.2} parent=58 // loop_footer_branch
                  %291 = sbr.rel target = $region68
                $region73: #{_lambda_.2} parent=58 // loop_exit
                  _
              $region59: #{_lambda_.2} parent=43 // pred_fallthru
                _
            $region44: #{_lambda_.2} parent=39 // pred_fallthru
              _
            // Predicated region
            $region45: #{_lambda_.2} parent=39 // pred_check
              _
            $region46: #{_lambda_.2} parent=39 // pred_check_branch
              %236 = sbr.rel (0) target = $region48
            $region47: #{_lambda_.2} parent=39 // pred_region
              %s238 = ssub.s32 16, 1
              loop: start=0, step=1, limit=1
              $region49: #{_lambda_.2} parent=47 // loop_pre_header
                _
              $region50: #{_lambda_.2} parent=47 // loop_header
                %s240 = sphi 0, %s244
                %p241 = scmp.ge.s32.totalorder %s240, 1
                %s245 = sphi %s230, %s230
                %s246 = sphi %s225, %s225
              $region51: #{_lambda_.2} parent=47 // loop_header_branch
                %243 = sbr.rel (%p241) target = $region55
              $region52: #{_lambda_.2} parent=47 // loop_body
                %v247 = vld [vmem:[%s245] sm:%s238]
                %248 = vst [vmem:[%s246] sm:%s238] %v247
                %v249 = vld [vmem:[%s245 + $0x8] sm:%s238]
                %250 = vst [vmem:[%s246 + $0x4] sm:%s238] %v249
                %v251 = vld [vmem:[%s245 + $0x10] sm:%s238]
                %252 = vst [vmem:[%s246 + $0x8] sm:%s238] %v251
                %v253 = vld [vmem:[%s245 + $0x18] sm:%s238]
                %254 = vst [vmem:[%s246 + $0xc] sm:%s238] %v253
                %v255 = vld [vmem:[%s245 + $0x20] sm:%s238]
                %256 = vst [vmem:[%s246 + $0x10] sm:%s238] %v255
                %v257 = vld [vmem:[%s245 + $0x28] sm:%s238]
                %258 = vst [vmem:[%s246 + $0x14] sm:%s238] %v257
                %v259 = vld [vmem:[%s245 + $0x30] sm:%s238]
                %260 = vst [vmem:[%s246 + $0x18] sm:%s238] %v259
                %v261 = vld [vmem:[%s245 + $0x38] sm:%s238]
                %262 = vst [vmem:[%s246 + $0x1c] sm:%s238] %v261
                %v263 = vld [vmem:[%s245 + $0x40] sm:%s238]
                %264 = vst [vmem:[%s246 + $0x20] sm:%s238] %v263
                %v265 = vld [vmem:[%s245 + $0x48] sm:%s238]
                %266 = vst [vmem:[%s246 + $0x24] sm:%s238] %v265
                %v267 = vld [vmem:[%s245 + $0x50] sm:%s238]
                %268 = vst [vmem:[%s246 + $0x28] sm:%s238] %v267
                %v269 = vld [vmem:[%s245 + $0x58] sm:%s238]
                %270 = vst [vmem:[%s246 + $0x2c] sm:%s238] %v269
                %v271 = vld [vmem:[%s245 + $0x60] sm:%s238]
                %272 = vst [vmem:[%s246 + $0x30] sm:%s238] %v271
                %v273 = vld [vmem:[%s245 + $0x68] sm:%s238]
                %274 = vst [vmem:[%s246 + $0x34] sm:%s238] %v273
                %v275 = vld [vmem:[%s245 + $0x70] sm:%s238]
                %276 = vst [vmem:[%s246 + $0x38] sm:%s238] %v275
                %v277 = vld [vmem:[%s245 + $0x78] sm:%s238]
                %278 = vst [vmem:[%s246 + $0x3c] sm:%s238] %v277
              $region53: #{_lambda_.2} parent=47 // loop_footer
                %s244 = sadd.s32 1, %s240
              $region54: #{_lambda_.2} parent=47 // loop_footer_branch
                %239 = sbr.rel target = $region50
              $region55: #{_lambda_.2} parent=47 // loop_exit
                _
            $region48: #{_lambda_.2} parent=39 // pred_fallthru
              _
          $region40: #{_lambda_.2} parent=35 // pred_fallthru
            _
          %331 = vnop
        $region36: #{_lambda_.2} parent=31 // pred_fallthru
          _
        // Predicated region
        $region74: #{_lambda_.2} parent=31 // pred_check
          %p332 = pneg %p72
        $region75: #{_lambda_.2} parent=31 // pred_check_branch
          %334 = sbr.rel (%p332) target = $region77
        $region76: #{_lambda_.2} parent=31 // pred_region
          %s335 = smul.u32 16, %s20
          %p336 = scmp.lt.s32.totalorder %s335, 31
          %s337 = scalar_select %p336, %s335, 31
          %s338 = smul.addr %s337, 4
          %s339 = scalar_lea.vmem %s1, %s338
          %s340 = smul.u32 16, %s20
        $region77: #{_lambda_.2} parent=31 // pred_fallthru
          _
      $region32: #{_lambda_.2} parent=5 // pred_fallthru
        _
      %p341 = scmp.le.s32.totalorder 1, %s12
      %p342 = scmp.lt.s32.totalorder %s12, 5
      %p343 = pnand %p341, %p342
      %p344 = pneg %p343
      // Predicated region
      $region78: #{_lambda_.2} parent=5 // pred_check
        _
      $region79: #{_lambda_.2} parent=5 // pred_check_branch
        %346 = sbr.rel (%p343) target = $region81
      $region80: #{_lambda_.2} parent=5 // pred_region
        %s347 = ssub.s32 %s12, 1
        %s348 = sand.u32 %s39, 1
        %s349 = sand.u32 %s39, 1
        %s350 = smul.addr %s349, 64
        %s351 = scalar_lea.vmem [#allocation3], %s350
        // Predicated region
        $region82: #{_lambda_.2} parent=80 // pred_check
          %p352 = pneg %p52
        $region83: #{_lambda_.2} parent=80 // pred_check_branch
          %354 = sbr.rel (%p352) target = $region85
        $region84: #{_lambda_.2} parent=80 // pred_region
          _
        $region85: #{_lambda_.2} parent=80 // pred_fallthru
          _
        %s355 = sand.u32 %s39, 1
        %s356 = sand.u32 %s39, 1
        %s357 = smul.addr %s356, 64
        %s358 = scalar_lea.vmem [#allocation3], %s357
        %p359 = pneg %p52
        %p360 = pneg %p49
        %s361 = smul.u32 16, %s22
        %p362 = scmp.lt.s32.totalorder %s361, 31
        %s363 = scalar_select %p362, %s361, 31
        %s364 = smul.addr %s363, 4
        %s365 = scalar_lea.vmem %s1, %s364
        %p366 = pneg %p78
        %p367 = pneg %p75
        %p368 = pneg %p99
        %p369 = pneg %p96
        %p370 = pneg %p120
        %p371 = pneg %p117
        %p372 = pneg %p141
        %p373 = pneg %p138
        %p374 = pneg %p162
        %p375 = pneg %p159
        %p376 = pneg %p188
        %p377 = pneg %p185
        %s378 = smul.u32 16, %s21
        %p379 = scmp.lt.s32.totalorder %s378, 31
        %s380 = scalar_select %p379, %s378, 31
        %s381 = smul.addr %s380, 4
        %s382 = scalar_lea.vmem %s6, %s381
        %s383 = smul.u32 16, %s21
        %s384 = smul.u32 16, %s22
        %p385 = scmp.lt.s32.totalorder %s384, 31
        %s386 = scalar_select %p385, %s384, 31
        %s387 = smul.addr %s386, 4
        %s388 = scalar_lea.vmem %s1, %s387
        %s389 = smul.u32 16, %s22
        %s390 = smul.u32 16, %s21
        %p391 = scmp.lt.s32.totalorder %s390, 31
        %s392 = scalar_select %p391, %s390, 31
        %s393 = smul.addr %s392, 4
        %s394 = scalar_lea.vmem %s6, %s393
        %s395 = smul.u32 16, %s21
        %p396 = scmp.eq.s32.totalorder %s22, 0
        // Predicated region
        $region86: #{_lambda_.2} parent=80 // pred_check
          %p397 = pneg %p396
        $region87: #{_lambda_.2} parent=80 // pred_check_branch
          %399 = sbr.rel (%p397) target = $region89
        $region88: #{_lambda_.2} parent=80 // pred_region
          %400 = vst [vmem:[#allocation2] sm:$0xff] 0.0
          %401 = vst [vmem:[#allocation2 + $0x8] sm:$0xff] 0.0
          %402 = vst [vmem:[#allocation2 + $0x10] sm:$0xff] 0.0
          %403 = vst [vmem:[#allocation2 + $0x18] sm:$0xff] 0.0
          %404 = vst [vmem:[#allocation2 + $0x20] sm:$0xff] 0.0
          %405 = vst [vmem:[#allocation2 + $0x28] sm:$0xff] 0.0
          %406 = vst [vmem:[#allocation2 + $0x30] sm:$0xff] 0.0
          %407 = vst [vmem:[#allocation2 + $0x38] sm:$0xff] 0.0
          %408 = vst [vmem:[#allocation2 + $0x40] sm:$0xff] 0.0
          %409 = vst [vmem:[#allocation2 + $0x48] sm:$0xff] 0.0
          %410 = vst [vmem:[#allocation2 + $0x50] sm:$0xff] 0.0
          %411 = vst [vmem:[#allocation2 + $0x58] sm:$0xff] 0.0
          %412 = vst [vmem:[#allocation2 + $0x60] sm:$0xff] 0.0
          %413 = vst [vmem:[#allocation2 + $0x68] sm:$0xff] 0.0
          %414 = vst [vmem:[#allocation2 + $0x70] sm:$0xff] 0.0
          %415 = vst [vmem:[#allocation2 + $0x78] sm:$0xff] 0.0
        $region89: #{_lambda_.2} parent=80 // pred_fallthru
          _
        %v416 = vld [vmem:[%s351] sm:$0xf]
        %v417 = vld [vmem:[%s351 + $0x4] sm:$0xf]
        %v418 = vld [vmem:[%s351 + $0x8] sm:$0xf]
        %v419 = vld [vmem:[%s351 + $0xc] sm:$0xf]
        %v420 = vld [vmem:[%s351 + $0x10] sm:$0xf]
        %v421 = vld [vmem:[%s351 + $0x14] sm:$0xf]
        %v422 = vld [vmem:[%s351 + $0x18] sm:$0xf]
        %v423 = vld [vmem:[%s351 + $0x1c] sm:$0xf]
        %v424 = vld [vmem:[%s351 + $0x20] sm:$0xf]
        %v425 = vld [vmem:[%s351 + $0x24] sm:$0xf]
        %v426 = vld [vmem:[%s351 + $0x28] sm:$0xf]
        %v427 = vld [vmem:[%s351 + $0x2c] sm:$0xf]
        %v428 = vld [vmem:[%s351 + $0x30] sm:$0xf]
        %v429 = vld [vmem:[%s351 + $0x34] sm:$0xf]
        %v430 = vld [vmem:[%s351 + $0x38] sm:$0xf]
        %v431 = vld [vmem:[%s351 + $0x3c] sm:$0xf]
        %v432 = vld [vmem:[%s388] sm:$0xf]
        %v433 = vld [vmem:[%s388 + $0x4] sm:$0xf]
        %v434 = vld [vmem:[%s388 + $0x8] sm:$0xf]
        %v435 = vld [vmem:[%s388 + $0xc] sm:$0xf]
        %v436 = vld [vmem:[%s388 + $0x10] sm:$0xf]
        %v437 = vld [vmem:[%s388 + $0x14] sm:$0xf]
        %v438 = vld [vmem:[%s388 + $0x18] sm:$0xf]
        %v439 = vld [vmem:[%s388 + $0x1c] sm:$0xf]
        %v440 = vld [vmem:[%s388 + $0x20] sm:$0xf]
        %v441 = vld [vmem:[%s388 + $0x24] sm:$0xf]
        %v442 = vld [vmem:[%s388 + $0x28] sm:$0xf]
        %v443 = vld [vmem:[%s388 + $0x2c] sm:$0xf]
        %v444 = vld [vmem:[%s388 + $0x30] sm:$0xf]
        %v445 = vld [vmem:[%s388 + $0x34] sm:$0xf]
        %v446 = vld [vmem:[%s388 + $0x38] sm:$0xf]
        %v447 = vld [vmem:[%s388 + $0x3c] sm:$0xf]
        %v448 = vld [vmem:[#allocation2] sm:$0xff]
        %v449 = vld [vmem:[#allocation2 + $0x8] sm:$0xff]
        %v450 = vld [vmem:[#allocation2 + $0x10] sm:$0xff]
        %v451 = vld [vmem:[#allocation2 + $0x18] sm:$0xff]
        %v452 = vld [vmem:[#allocation2 + $0x20] sm:$0xff]
        %v453 = vld [vmem:[#allocation2 + $0x28] sm:$0xff]
        %v454 = vld [vmem:[#allocation2 + $0x30] sm:$0xff]
        %v455 = vld [vmem:[#allocation2 + $0x38] sm:$0xff]
        %v456 = vld [vmem:[#allocation2 + $0x40] sm:$0xff]
        %v457 = vld [vmem:[#allocation2 + $0x48] sm:$0xff]
        %v458 = vld [vmem:[#allocation2 + $0x50] sm:$0xff]
        %v459 = vld [vmem:[#allocation2 + $0x58] sm:$0xff]
        %v460 = vld [vmem:[#allocation2 + $0x60] sm:$0xff]
        %v461 = vld [vmem:[#allocation2 + $0x68] sm:$0xff]
        %v462 = vld [vmem:[#allocation2 + $0x70] sm:$0xff]
        %v463 = vld [vmem:[#allocation2 + $0x78] sm:$0xff]
        %v480 = vunpack.c.l.b16 %v416
        %v481 = vunpack.c.l.b16 %v417
        %v482 = vunpack.c.l.b16 %v418
        %v483 = vunpack.c.l.b16 %v419
        %v484 = vunpack.c.l.b16 %v420
        %v485 = vunpack.c.l.b16 %v421
        %v486 = vunpack.c.l.b16 %v422
        %v487 = vunpack.c.l.b16 %v423
        %v488 = vunpack.c.l.b16 %v424
        %v489 = vunpack.c.l.b16 %v425
        %v490 = vunpack.c.l.b16 %v426
        %v491 = vunpack.c.l.b16 %v427
        %v492 = vunpack.c.l.b16 %v428
        %v493 = vunpack.c.l.b16 %v429
        %v494 = vunpack.c.l.b16 %v430
        %v495 = vunpack.c.l.b16 %v431
        %v496 = vpack.c.b16 %v481, %v480
        %v497 = vpack.c.b16 %v483, %v482
        %v498 = vpack.c.b16 %v485, %v484
        %v499 = vpack.c.b16 %v487, %v486
        %v500 = vpack.c.b16 %v489, %v488
        %v501 = vpack.c.b16 %v491, %v490
        %v502 = vpack.c.b16 %v493, %v492
        %v503 = vpack.c.b16 %v495, %v494
        %v528 = vunpack.c.l.b16 %v432
        %v529 = vunpack.c.l.b16 %v433
        %v530 = vunpack.c.l.b16 %v434
        %v531 = vunpack.c.l.b16 %v435
        %v532 = vunpack.c.l.b16 %v436
        %v533 = vunpack.c.l.b16 %v437
        %v534 = vunpack.c.l.b16 %v438
        %v535 = vunpack.c.l.b16 %v439
        %v536 = vunpack.c.l.b16 %v440
        %v537 = vunpack.c.l.b16 %v441
        %v538 = vunpack.c.l.b16 %v442
        %v539 = vunpack.c.l.b16 %v443
        %v540 = vunpack.c.l.b16 %v444
        %v541 = vunpack.c.l.b16 %v445
        %v542 = vunpack.c.l.b16 %v446
        %v543 = vunpack.c.l.b16 %v447
        %v544 = vpack.c.b16 %v529, %v528
        %v545 = vpack.c.b16 %v531, %v530
        %v546 = vpack.c.b16 %v533, %v532
        %v547 = vpack.c.b16 %v535, %v534
        %v548 = vpack.c.b16 %v537, %v536
        %v549 = vpack.c.b16 %v539, %v538
        %v550 = vpack.c.b16 %v541, %v540
        %v551 = vpack.c.b16 %v543, %v542
        %560 = vmatpush.bf16.msra.mxu0 %v551
        %561 = vmatpush.bf16.msra.mxu0 %v550
        %562 = vmatpush.bf16.msra.mxu0 %v549
        %563 = vmatpush.bf16.msra.mxu0 %v548
        %564 = vmatpush.bf16.msra.mxu0 %v547
        %565 = vmatpush.bf16.msra.mxu0 %v546
        %566 = vmatpush.bf16.msra.mxu0 %v545
        %567 = vmatpush.bf16.msra.mxu0 %v544
        %568 = vmatmul.bf16.gmra.mxu0 %v496
        %v569 = vpop.f32.mrf.mxu0
        %v570 = vadd.f32 0.0, %v569
        %v571 = vpop.f32.mrf.mxu0
        %v572 = vadd.f32 0.0, %v571
        %573 = vmatmul.bf16.gmra.mxu0 %v497
        %v574 = vpop.f32.mrf.mxu0
        %v575 = vadd.f32 0.0, %v574
        %v576 = vpop.f32.mrf.mxu0
        %v577 = vadd.f32 0.0, %v576
        %578 = vmatmul.bf16.gmra.mxu0 %v498
        %v579 = vpop.f32.mrf.mxu0
        %v580 = vadd.f32 0.0, %v579
        %v581 = vpop.f32.mrf.mxu0
        %v582 = vadd.f32 0.0, %v581
        %583 = vmatmul.bf16.gmra.mxu0 %v499
        %v584 = vpop.f32.mrf.mxu0
        %v585 = vadd.f32 0.0, %v584
        %v586 = vpop.f32.mrf.mxu0
        %v587 = vadd.f32 0.0, %v586
        %588 = vmatmul.bf16.gmra.mxu0 %v500
        %v589 = vpop.f32.mrf.mxu0
        %v590 = vadd.f32 0.0, %v589
        %v591 = vpop.f32.mrf.mxu0
        %v592 = vadd.f32 0.0, %v591
        %593 = vmatmul.bf16.gmra.mxu0 %v501
        %v594 = vpop.f32.mrf.mxu0
        %v595 = vadd.f32 0.0, %v594
        %v596 = vpop.f32.mrf.mxu0
        %v597 = vadd.f32 0.0, %v596
        %598 = vmatmul.bf16.gmra.mxu0 %v502
        %v599 = vpop.f32.mrf.mxu0
        %v600 = vadd.f32 0.0, %v599
        %v601 = vpop.f32.mrf.mxu0
        %v602 = vadd.f32 0.0, %v601
        %603 = vmatmul.bf16.gmra.mxu0 %v503
        %v604 = vpop.f32.mrf.mxu0
        %v605 = vadd.f32 0.0, %v604
        %v606 = vpop.f32.mrf.mxu0
        %v607 = vadd.f32 0.0, %v606
        %608 = vdwg.mxu0
        %v609 = vadd.f32 %v448, %v570
        %v610 = vadd.f32 %v449, %v572
        %v611 = vadd.f32 %v450, %v575
        %v612 = vadd.f32 %v451, %v577
        %v613 = vadd.f32 %v452, %v580
        %v614 = vadd.f32 %v453, %v582
        %v615 = vadd.f32 %v454, %v585
        %v616 = vadd.f32 %v455, %v587
        %v617 = vadd.f32 %v456, %v590
        %v618 = vadd.f32 %v457, %v592
        %v619 = vadd.f32 %v458, %v595
        %v620 = vadd.f32 %v459, %v597
        %v621 = vadd.f32 %v460, %v600
        %v622 = vadd.f32 %v461, %v602
        %v623 = vadd.f32 %v462, %v605
        %v624 = vadd.f32 %v463, %v607
        %625 = vst [vmem:[#allocation2] sm:$0xff] %v609
        %626 = vst [vmem:[#allocation2 + $0x8] sm:$0xff] %v610
        %627 = vst [vmem:[#allocation2 + $0x10] sm:$0xff] %v611
        %628 = vst [vmem:[#allocation2 + $0x18] sm:$0xff] %v612
        %629 = vst [vmem:[#allocation2 + $0x20] sm:$0xff] %v613
        %630 = vst [vmem:[#allocation2 + $0x28] sm:$0xff] %v614
        %631 = vst [vmem:[#allocation2 + $0x30] sm:$0xff] %v615
        %632 = vst [vmem:[#allocation2 + $0x38] sm:$0xff] %v616
        %633 = vst [vmem:[#allocation2 + $0x40] sm:$0xff] %v617
        %634 = vst [vmem:[#allocation2 + $0x48] sm:$0xff] %v618
        %635 = vst [vmem:[#allocation2 + $0x50] sm:$0xff] %v619
        %636 = vst [vmem:[#allocation2 + $0x58] sm:$0xff] %v620
        %637 = vst [vmem:[#allocation2 + $0x60] sm:$0xff] %v621
        %638 = vst [vmem:[#allocation2 + $0x68] sm:$0xff] %v622
        %639 = vst [vmem:[#allocation2 + $0x70] sm:$0xff] %v623
        %640 = vst [vmem:[#allocation2 + $0x78] sm:$0xff] %v624
        %p641 = scmp.eq.s32.totalorder %s22, 1
        // Predicated region
        $region90: #{_lambda_.2} parent=80 // pred_check
          %p642 = pneg %p641
        $region91: #{_lambda_.2} parent=80 // pred_check_branch
          %644 = sbr.rel (%p642) target = $region93
        $region92: #{_lambda_.2} parent=80 // pred_region
          %v645 = vld [vmem:[#allocation2] sm:$0xff]
          %v646 = vld [vmem:[#allocation2 + $0x8] sm:$0xff]
          %v647 = vld [vmem:[#allocation2 + $0x10] sm:$0xff]
          %v648 = vld [vmem:[#allocation2 + $0x18] sm:$0xff]
          %v649 = vld [vmem:[#allocation2 + $0x20] sm:$0xff]
          %v650 = vld [vmem:[#allocation2 + $0x28] sm:$0xff]
          %v651 = vld [vmem:[#allocation2 + $0x30] sm:$0xff]
          %v652 = vld [vmem:[#allocation2 + $0x38] sm:$0xff]
          %v653 = vld [vmem:[#allocation2 + $0x40] sm:$0xff]
          %v654 = vld [vmem:[#allocation2 + $0x48] sm:$0xff]
          %v655 = vld [vmem:[#allocation2 + $0x50] sm:$0xff]
          %v656 = vld [vmem:[#allocation2 + $0x58] sm:$0xff]
          %v657 = vld [vmem:[#allocation2 + $0x60] sm:$0xff]
          %v658 = vld [vmem:[#allocation2 + $0x68] sm:$0xff]
          %v659 = vld [vmem:[#allocation2 + $0x70] sm:$0xff]
          %v660 = vld [vmem:[#allocation2 + $0x78] sm:$0xff]
          %v661 = vld [vmem:[%s2] sm:$0xff]
          %v662 = vld [vmem:[%s2 + $0x8] sm:$0xff]
          %v663 = vld [vmem:[%s2 + $0x10] sm:$0xff]
          %v664 = vld [vmem:[%s2 + $0x18] sm:$0xff]
          %v665 = vld [vmem:[%s2 + $0x20] sm:$0xff]
          %v666 = vld [vmem:[%s2 + $0x28] sm:$0xff]
          %v667 = vld [vmem:[%s2 + $0x30] sm:$0xff]
          %v668 = vld [vmem:[%s2 + $0x38] sm:$0xff]
          %v669 = vld [vmem:[%s2 + $0x40] sm:$0xff]
          %v670 = vld [vmem:[%s2 + $0x48] sm:$0xff]
          %v671 = vld [vmem:[%s2 + $0x50] sm:$0xff]
          %v672 = vld [vmem:[%s2 + $0x58] sm:$0xff]
          %v673 = vld [vmem:[%s2 + $0x60] sm:$0xff]
          %v674 = vld [vmem:[%s2 + $0x68] sm:$0xff]
          %v675 = vld [vmem:[%s2 + $0x70] sm:$0xff]
          %v676 = vld [vmem:[%s2 + $0x78] sm:$0xff]
          %v677 = vld [vmem:[%s3] sm:$0x1]
          %v679 = vperm.slane %v677, 0
          %681 = vmatpush.msra.mxu0 %v676
          %682 = vmatpush.msra.mxu0 %v675
          %683 = vmatpush.msra.mxu0 %v674
          %684 = vmatpush.msra.mxu0 %v673
          %685 = vmatpush.msra.mxu0 %v672
          %686 = vmatpush.msra.mxu0 %v671
          %687 = vmatpush.msra.mxu0 %v670
          %688 = vmatpush.msra.mxu0 %v669
          %689 = vmatpush.msra.mxu0 %v668
          %690 = vmatpush.msra.mxu0 %v667
          %691 = vmatpush.msra.mxu0 %v666
          %692 = vmatpush.msra.mxu0 %v665
          %693 = vmatpush.msra.mxu0 %v664
          %694 = vmatpush.msra.mxu0 %v663
          %695 = vmatpush.msra.mxu0 %v662
          %696 = vmatpush.msra.mxu0 %v661
          %697 = vmatmul.f32.gmra.mxu0 %v645
          %v698 = vpop.f32.mrf.mxu0
          %v699 = vadd.f32 %v679, %v698
          %700 = vmatmul.f32.gmra.mxu0 %v646
          %v701 = vpop.f32.mrf.mxu0
          %v702 = vadd.f32 %v679, %v701
          %703 = vmatmul.f32.gmra.mxu0 %v647
          %v704 = vpop.f32.mrf.mxu0
          %v705 = vadd.f32 %v679, %v704
          %706 = vmatmul.f32.gmra.mxu0 %v648
          %v707 = vpop.f32.mrf.mxu0
          %v708 = vadd.f32 %v679, %v707
          %709 = vmatmul.f32.gmra.mxu0 %v649
          %v710 = vpop.f32.mrf.mxu0
          %v711 = vadd.f32 %v679, %v710
          %712 = vmatmul.f32.gmra.mxu0 %v650
          %v713 = vpop.f32.mrf.mxu0
          %v714 = vadd.f32 %v679, %v713
          %715 = vmatmul.f32.gmra.mxu0 %v651
          %v716 = vpop.f32.mrf.mxu0
          %v717 = vadd.f32 %v679, %v716
          %718 = vmatmul.f32.gmra.mxu0 %v652
          %v719 = vpop.f32.mrf.mxu0
          %v720 = vadd.f32 %v679, %v719
          %721 = vmatmul.f32.gmra.mxu0 %v653
          %v722 = vpop.f32.mrf.mxu0
          %v723 = vadd.f32 %v679, %v722
          %724 = vmatmul.f32.gmra.mxu0 %v654
          %v725 = vpop.f32.mrf.mxu0
          %v726 = vadd.f32 %v679, %v725
          %727 = vmatmul.f32.gmra.mxu0 %v655
          %v728 = vpop.f32.mrf.mxu0
          %v729 = vadd.f32 %v679, %v728
          %730 = vmatmul.f32.gmra.mxu0 %v656
          %v731 = vpop.f32.mrf.mxu0
          %v732 = vadd.f32 %v679, %v731
          %733 = vmatmul.f32.gmra.mxu0 %v657
          %v734 = vpop.f32.mrf.mxu0
          %v735 = vadd.f32 %v679, %v734
          %736 = vmatmul.f32.gmra.mxu0 %v658
          %v737 = vpop.f32.mrf.mxu0
          %v738 = vadd.f32 %v679, %v737
          %739 = vmatmul.f32.gmra.mxu0 %v659
          %v740 = vpop.f32.mrf.mxu0
          %v741 = vadd.f32 %v679, %v740
          %742 = vmatmul.f32.gmra.mxu0 %v660
          %v743 = vpop.f32.mrf.mxu0
          %v744 = vadd.f32 %v679, %v743
          %745 = vdwg.mxu0
          %746 = vadd.xlane.f32.xlu0 %v699
          %v747 = vpop.xlane.xlu0 %746
          %748 = vadd.xlane.f32.xlu0 %v702
          %v749 = vpop.xlane.xlu0 %748
          %750 = vadd.xlane.f32.xlu0 %v705
          %v751 = vpop.xlane.xlu0 %750
          %752 = vadd.xlane.f32.xlu0 %v708
          %v753 = vpop.xlane.xlu0 %752
          %754 = vadd.xlane.f32.xlu0 %v711
          %v755 = vpop.xlane.xlu0 %754
          %756 = vadd.xlane.f32.xlu0 %v714
          %v757 = vpop.xlane.xlu0 %756
          %758 = vadd.xlane.f32.xlu0 %v717
          %v759 = vpop.xlane.xlu0 %758
          %760 = vadd.xlane.f32.xlu0 %v720
          %v761 = vpop.xlane.xlu0 %760
          %762 = vadd.xlane.f32.xlu0 %v723
          %v763 = vpop.xlane.xlu0 %762
          %764 = vadd.xlane.f32.xlu0 %v726
          %v765 = vpop.xlane.xlu0 %764
          %766 = vadd.xlane.f32.xlu0 %v729
          %v767 = vpop.xlane.xlu0 %766
          %768 = vadd.xlane.f32.xlu0 %v732
          %v769 = vpop.xlane.xlu0 %768
          %770 = vadd.xlane.f32.xlu0 %v735
          %v771 = vpop.xlane.xlu0 %770
          %772 = vadd.xlane.f32.xlu0 %v738
          %v773 = vpop.xlane.xlu0 %772
          %774 = vadd.xlane.f32.xlu0 %v741
          %v775 = vpop.xlane.xlu0 %774
          %776 = vadd.xlane.f32.xlu0 %v744
          %v777 = vpop.xlane.xlu0 %776
          %v778 = vrcp.pop 128.0
          %v779 = vmul.f32 128.0, %v778
          %v780 = vsub.f32 1.0, %v779
          %v781 = vmul.f32 %v778, %v780
          %v782 = vadd.f32 %v778, %v781
          %vm783 = vweird.f32 %v778
          %v784 = vsel %vm783, %v778, %v782
          %v785 = vmul.f32 %v747, %v784
          %v786 = vmul.f32 %v749, %v784
          %v787 = vmul.f32 %v751, %v784
          %v788 = vmul.f32 %v753, %v784
          %v789 = vmul.f32 %v755, %v784
          %v790 = vmul.f32 %v757, %v784
          %v791 = vmul.f32 %v759, %v784
          %v792 = vmul.f32 %v761, %v784
          %v793 = vmul.f32 %v763, %v784
          %v794 = vmul.f32 %v765, %v784
          %v795 = vmul.f32 %v767, %v784
          %v796 = vmul.f32 %v769, %v784
          %v797 = vmul.f32 %v771, %v784
          %v798 = vmul.f32 %v773, %v784
          %v799 = vmul.f32 %v775, %v784
          %v800 = vmul.f32 %v777, %v784
          %v801 = vsub.f32 %v699, %v785
          %v802 = vsub.f32 %v702, %v786
          %v803 = vsub.f32 %v705, %v787
          %v804 = vsub.f32 %v708, %v788
          %v805 = vsub.f32 %v711, %v789
          %v806 = vsub.f32 %v714, %v790
          %v807 = vsub.f32 %v717, %v791
          %v808 = vsub.f32 %v720, %v792
          %v809 = vsub.f32 %v723, %v793
          %v810 = vsub.f32 %v726, %v794
          %v811 = vsub.f32 %v729, %v795
          %v812 = vsub.f32 %v732, %v796
          %v813 = vsub.f32 %v735, %v797
          %v814 = vsub.f32 %v738, %v798
          %v815 = vsub.f32 %v741, %v799
          %v816 = vsub.f32 %v744, %v800
          %v817 = vmul.f32 %v801, %v801
          %v818 = vmul.f32 %v802, %v802
          %v819 = vmul.f32 %v803, %v803
          %v820 = vmul.f32 %v804, %v804
          %v821 = vmul.f32 %v805, %v805
          %v822 = vmul.f32 %v806, %v806
          %v823 = vmul.f32 %v807, %v807
          %v824 = vmul.f32 %v808, %v808
          %v825 = vmul.f32 %v809, %v809
          %v826 = vmul.f32 %v810, %v810
          %v827 = vmul.f32 %v811, %v811
          %v828 = vmul.f32 %v812, %v812
          %v829 = vmul.f32 %v813, %v813
          %v830 = vmul.f32 %v814, %v814
          %v831 = vmul.f32 %v815, %v815
          %v832 = vmul.f32 %v816, %v816
          %833 = vadd.xlane.f32.xlu0 %v817
          %v834 = vpop.xlane.xlu0 %833
          %835 = vadd.xlane.f32.xlu0 %v818
          %v836 = vpop.xlane.xlu0 %835
          %837 = vadd.xlane.f32.xlu0 %v819
          %v838 = vpop.xlane.xlu0 %837
          %839 = vadd.xlane.f32.xlu0 %v820
          %v840 = vpop.xlane.xlu0 %839
          %841 = vadd.xlane.f32.xlu0 %v821
          %v842 = vpop.xlane.xlu0 %841
          %843 = vadd.xlane.f32.xlu0 %v822
          %v844 = vpop.xlane.xlu0 %843
          %845 = vadd.xlane.f32.xlu0 %v823
          %v846 = vpop.xlane.xlu0 %845
          %847 = vadd.xlane.f32.xlu0 %v824
          %v848 = vpop.xlane.xlu0 %847
          %849 = vadd.xlane.f32.xlu0 %v825
          %v850 = vpop.xlane.xlu0 %849
          %851 = vadd.xlane.f32.xlu0 %v826
          %v852 = vpop.xlane.xlu0 %851
          %853 = vadd.xlane.f32.xlu0 %v827
          %v854 = vpop.xlane.xlu0 %853
          %855 = vadd.xlane.f32.xlu0 %v828
          %v856 = vpop.xlane.xlu0 %855
          %857 = vadd.xlane.f32.xlu0 %v829
          %v858 = vpop.xlane.xlu0 %857
          %859 = vadd.xlane.f32.xlu0 %v830
          %v860 = vpop.xlane.xlu0 %859
          %861 = vadd.xlane.f32.xlu0 %v831
          %v862 = vpop.xlane.xlu0 %861
          %863 = vadd.xlane.f32.xlu0 %v832
          %v864 = vpop.xlane.xlu0 %863
          %v865 = vmul.f32 %v834, %v784
          %v866 = vmul.f32 %v836, %v784
          %v867 = vmul.f32 %v838, %v784
          %v868 = vmul.f32 %v840, %v784
          %v869 = vmul.f32 %v842, %v784
          %v870 = vmul.f32 %v844, %v784
          %v871 = vmul.f32 %v846, %v784
          %v872 = vmul.f32 %v848, %v784
          %v873 = vmul.f32 %v850, %v784
          %v874 = vmul.f32 %v852, %v784
          %v875 = vmul.f32 %v854, %v784
          %v876 = vmul.f32 %v856, %v784
          %v877 = vmul.f32 %v858, %v784
          %v878 = vmul.f32 %v860, %v784
          %v879 = vmul.f32 %v862, %v784
          %v880 = vmul.f32 %v864, %v784
          %v881 = vadd.f32 %v865, 1e-05
          %v882 = vadd.f32 %v866, 1e-05
          %v883 = vadd.f32 %v867, 1e-05
          %v884 = vadd.f32 %v868, 1e-05
          %v885 = vadd.f32 %v869, 1e-05
          %v886 = vadd.f32 %v870, 1e-05
          %v887 = vadd.f32 %v871, 1e-05
          %v888 = vadd.f32 %v872, 1e-05
          %v889 = vadd.f32 %v873, 1e-05
          %v890 = vadd.f32 %v874, 1e-05
          %v891 = vadd.f32 %v875, 1e-05
          %v892 = vadd.f32 %v876, 1e-05
          %v893 = vadd.f32 %v877, 1e-05
          %v894 = vadd.f32 %v878, 1e-05
          %v895 = vadd.f32 %v879, 1e-05
          %v896 = vadd.f32 %v880, 1e-05
          %v897 = vrsqrt.pop %v881
          %v898 = vmul.f32 %v897, %v881
          %v899 = vmul.f32 %v898, %v897
          %v900 = vmul.f32 0.5, %v899
          %v901 = vsub.f32 1.5, %v900
          %v902 = vmul.f32 %v897, %v901
          %vm903 = vweird.f32 %v881
          %vm904 = vweird.f32 %v897
          %vm905 = vmor %vm903, %vm904
          %v906 = vsel %vm905, %v897, %v902
          %v907 = vrsqrt.pop %v882
          %v908 = vmul.f32 %v907, %v882
          %v909 = vmul.f32 %v908, %v907
          %v910 = vmul.f32 0.5, %v909
          %v911 = vsub.f32 1.5, %v910
          %v912 = vmul.f32 %v907, %v911
          %vm913 = vweird.f32 %v882
          %vm914 = vweird.f32 %v907
          %vm915 = vmor %vm913, %vm914
          %v916 = vsel %vm915, %v907, %v912
          %v917 = vrsqrt.pop %v883
          %v918 = vmul.f32 %v917, %v883
          %v919 = vmul.f32 %v918, %v917
          %v920 = vmul.f32 0.5, %v919
          %v921 = vsub.f32 1.5, %v920
          %v922 = vmul.f32 %v917, %v921
          %vm923 = vweird.f32 %v883
          %vm924 = vweird.f32 %v917
          %vm925 = vmor %vm923, %vm924
          %v926 = vsel %vm925, %v917, %v922
          %v927 = vrsqrt.pop %v884
          %v928 = vmul.f32 %v927, %v884
          %v929 = vmul.f32 %v928, %v927
          %v930 = vmul.f32 0.5, %v929
          %v931 = vsub.f32 1.5, %v930
          %v932 = vmul.f32 %v927, %v931
          %vm933 = vweird.f32 %v884
          %vm934 = vweird.f32 %v927
          %vm935 = vmor %vm933, %vm934
          %v936 = vsel %vm935, %v927, %v932
          %v937 = vrsqrt.pop %v885
          %v938 = vmul.f32 %v937, %v885
          %v939 = vmul.f32 %v938, %v937
          %v940 = vmul.f32 0.5, %v939
          %v941 = vsub.f32 1.5, %v940
          %v942 = vmul.f32 %v937, %v941
          %vm943 = vweird.f32 %v885
          %vm944 = vweird.f32 %v937
          %vm945 = vmor %vm943, %vm944
          %v946 = vsel %vm945, %v937, %v942
          %v947 = vrsqrt.pop %v886
          %v948 = vmul.f32 %v947, %v886
          %v949 = vmul.f32 %v948, %v947
          %v950 = vmul.f32 0.5, %v949
          %v951 = vsub.f32 1.5, %v950
          %v952 = vmul.f32 %v947, %v951
          %vm953 = vweird.f32 %v886
          %vm954 = vweird.f32 %v947
          %vm955 = vmor %vm953, %vm954
          %v956 = vsel %vm955, %v947, %v952
          %v957 = vrsqrt.pop %v887
          %v958 = vmul.f32 %v957, %v887
          %v959 = vmul.f32 %v958, %v957
          %v960 = vmul.f32 0.5, %v959
          %v961 = vsub.f32 1.5, %v960
          %v962 = vmul.f32 %v957, %v961
          %vm963 = vweird.f32 %v887
          %vm964 = vweird.f32 %v957
          %vm965 = vmor %vm963, %vm964
          %v966 = vsel %vm965, %v957, %v962
          %v967 = vrsqrt.pop %v888
          %v968 = vmul.f32 %v967, %v888
          %v969 = vmul.f32 %v968, %v967
          %v970 = vmul.f32 0.5, %v969
          %v971 = vsub.f32 1.5, %v970
          %v972 = vmul.f32 %v967, %v971
          %vm973 = vweird.f32 %v888
          %vm974 = vweird.f32 %v967
          %vm975 = vmor %vm973, %vm974
          %v976 = vsel %vm975, %v967, %v972
          %v977 = vrsqrt.pop %v889
          %v978 = vmul.f32 %v977, %v889
          %v979 = vmul.f32 %v978, %v977
          %v980 = vmul.f32 0.5, %v979
          %v981 = vsub.f32 1.5, %v980
          %v982 = vmul.f32 %v977, %v981
          %vm983 = vweird.f32 %v889
          %vm984 = vweird.f32 %v977
          %vm985 = vmor %vm983, %vm984
          %v986 = vsel %vm985, %v977, %v982
          %v987 = vrsqrt.pop %v890
          %v988 = vmul.f32 %v987, %v890
          %v989 = vmul.f32 %v988, %v987
          %v990 = vmul.f32 0.5, %v989
          %v991 = vsub.f32 1.5, %v990
          %v992 = vmul.f32 %v987, %v991
          %vm993 = vweird.f32 %v890
          %vm994 = vweird.f32 %v987
          %vm995 = vmor %vm993, %vm994
          %v996 = vsel %vm995, %v987, %v992
          %v997 = vrsqrt.pop %v891
          %v998 = vmul.f32 %v997, %v891
          %v999 = vmul.f32 %v998, %v997
          %v1000 = vmul.f32 0.5, %v999
          %v1001 = vsub.f32 1.5, %v1000
          %v1002 = vmul.f32 %v997, %v1001
          %vm1003 = vweird.f32 %v891
          %vm1004 = vweird.f32 %v997
          %vm1005 = vmor %vm1003, %vm1004
          %v1006 = vsel %vm1005, %v997, %v1002
          %v1007 = vrsqrt.pop %v892
          %v1008 = vmul.f32 %v1007, %v892
          %v1009 = vmul.f32 %v1008, %v1007
          %v1010 = vmul.f32 0.5, %v1009
          %v1011 = vsub.f32 1.5, %v1010
          %v1012 = vmul.f32 %v1007, %v1011
          %vm1013 = vweird.f32 %v892
          %vm1014 = vweird.f32 %v1007
          %vm1015 = vmor %vm1013, %vm1014
          %v1016 = vsel %vm1015, %v1007, %v1012
          %v1017 = vrsqrt.pop %v893
          %v1018 = vmul.f32 %v1017, %v893
          %v1019 = vmul.f32 %v1018, %v1017
          %v1020 = vmul.f32 0.5, %v1019
          %v1021 = vsub.f32 1.5, %v1020
          %v1022 = vmul.f32 %v1017, %v1021
          %vm1023 = vweird.f32 %v893
          %vm1024 = vweird.f32 %v1017
          %vm1025 = vmor %vm1023, %vm1024
          %v1026 = vsel %vm1025, %v1017, %v1022
          %v1027 = vrsqrt.pop %v894
          %v1028 = vmul.f32 %v1027, %v894
          %v1029 = vmul.f32 %v1028, %v1027
          %v1030 = vmul.f32 0.5, %v1029
          %v1031 = vsub.f32 1.5, %v1030
          %v1032 = vmul.f32 %v1027, %v1031
          %vm1033 = vweird.f32 %v894
          %vm1034 = vweird.f32 %v1027
          %vm1035 = vmor %vm1033, %vm1034
          %v1036 = vsel %vm1035, %v1027, %v1032
          %v1037 = vrsqrt.pop %v895
          %v1038 = vmul.f32 %v1037, %v895
          %v1039 = vmul.f32 %v1038, %v1037
          %v1040 = vmul.f32 0.5, %v1039
          %v1041 = vsub.f32 1.5, %v1040
          %v1042 = vmul.f32 %v1037, %v1041
          %vm1043 = vweird.f32 %v895
          %vm1044 = vweird.f32 %v1037
          %vm1045 = vmor %vm1043, %vm1044
          %v1046 = vsel %vm1045, %v1037, %v1042
          %v1047 = vrsqrt.pop %v896
          %v1048 = vmul.f32 %v1047, %v896
          %v1049 = vmul.f32 %v1048, %v1047
          %v1050 = vmul.f32 0.5, %v1049
          %v1051 = vsub.f32 1.5, %v1050
          %v1052 = vmul.f32 %v1047, %v1051
          %vm1053 = vweird.f32 %v896
          %vm1054 = vweird.f32 %v1047
          %vm1055 = vmor %vm1053, %vm1054
          %v1056 = vsel %vm1055, %v1047, %v1052
          %v1057 = vmul.f32 %v801, %v906
          %v1058 = vmul.f32 %v802, %v916
          %v1059 = vmul.f32 %v803, %v926
          %v1060 = vmul.f32 %v804, %v936
          %v1061 = vmul.f32 %v805, %v946
          %v1062 = vmul.f32 %v806, %v956
          %v1063 = vmul.f32 %v807, %v966
          %v1064 = vmul.f32 %v808, %v976
          %v1065 = vmul.f32 %v809, %v986
          %v1066 = vmul.f32 %v810, %v996
          %v1067 = vmul.f32 %v811, %v1006
          %v1068 = vmul.f32 %v812, %v1016
          %v1069 = vmul.f32 %v813, %v1026
          %v1070 = vmul.f32 %v814, %v1036
          %v1071 = vmul.f32 %v815, %v1046
          %v1072 = vmul.f32 %v816, %v1056
          %v1073 = vld [vmem:[%s4] sm:$0x1]
          %v1075 = vperm.slane %v1073, 0
          %v1077 = vmul.f32 %v1057, %v1075
          %v1078 = vmul.f32 %v1058, %v1075
          %v1079 = vmul.f32 %v1059, %v1075
          %v1080 = vmul.f32 %v1060, %v1075
          %v1081 = vmul.f32 %v1061, %v1075
          %v1082 = vmul.f32 %v1062, %v1075
          %v1083 = vmul.f32 %v1063, %v1075
          %v1084 = vmul.f32 %v1064, %v1075
          %v1085 = vmul.f32 %v1065, %v1075
          %v1086 = vmul.f32 %v1066, %v1075
          %v1087 = vmul.f32 %v1067, %v1075
          %v1088 = vmul.f32 %v1068, %v1075
          %v1089 = vmul.f32 %v1069, %v1075
          %v1090 = vmul.f32 %v1070, %v1075
          %v1091 = vmul.f32 %v1071, %v1075
          %v1092 = vmul.f32 %v1072, %v1075
          %v1093 = vld [vmem:[%s5] sm:$0x1]
          %v1095 = vperm.slane %v1093, 0
          %v1097 = vadd.f32 %v1077, %v1095
          %v1098 = vadd.f32 %v1078, %v1095
          %v1099 = vadd.f32 %v1079, %v1095
          %v1100 = vadd.f32 %v1080, %v1095
          %v1101 = vadd.f32 %v1081, %v1095
          %v1102 = vadd.f32 %v1082, %v1095
          %v1103 = vadd.f32 %v1083, %v1095
          %v1104 = vadd.f32 %v1084, %v1095
          %v1105 = vadd.f32 %v1085, %v1095
          %v1106 = vadd.f32 %v1086, %v1095
          %v1107 = vadd.f32 %v1087, %v1095
          %v1108 = vadd.f32 %v1088, %v1095
          %v1109 = vadd.f32 %v1089, %v1095
          %v1110 = vadd.f32 %v1090, %v1095
          %v1111 = vadd.f32 %v1091, %v1095
          %v1112 = vadd.f32 %v1092, %v1095
          %v1113 = vmax.f32 %v1097, 0.0
          %v1114 = vmax.f32 %v1098, 0.0
          %v1115 = vmax.f32 %v1099, 0.0
          %v1116 = vmax.f32 %v1100, 0.0
          %v1117 = vmax.f32 %v1101, 0.0
          %v1118 = vmax.f32 %v1102, 0.0
          %v1119 = vmax.f32 %v1103, 0.0
          %v1120 = vmax.f32 %v1104, 0.0
          %v1121 = vmax.f32 %v1105, 0.0
          %v1122 = vmax.f32 %v1106, 0.0
          %v1123 = vmax.f32 %v1107, 0.0
          %v1124 = vmax.f32 %v1108, 0.0
          %v1125 = vmax.f32 %v1109, 0.0
          %v1126 = vmax.f32 %v1110, 0.0
          %v1127 = vmax.f32 %v1111, 0.0
          %v1128 = vmax.f32 %v1112, 0.0
          %v1129 = vpack.c.bf16 %v1113, %v1113
          %v1130 = vpack.c.bf16 %v1114, %v1114
          %v1131 = vpack.c.bf16 %v1115, %v1115
          %v1132 = vpack.c.bf16 %v1116, %v1116
          %v1133 = vpack.c.bf16 %v1117, %v1117
          %v1134 = vpack.c.bf16 %v1118, %v1118
          %v1135 = vpack.c.bf16 %v1119, %v1119
          %v1136 = vpack.c.bf16 %v1120, %v1120
          %v1137 = vpack.c.bf16 %v1121, %v1121
          %v1138 = vpack.c.bf16 %v1122, %v1122
          %v1139 = vpack.c.bf16 %v1123, %v1123
          %v1140 = vpack.c.bf16 %v1124, %v1124
          %v1141 = vpack.c.bf16 %v1125, %v1125
          %v1142 = vpack.c.bf16 %v1126, %v1126
          %v1143 = vpack.c.bf16 %v1127, %v1127
          %v1144 = vpack.c.bf16 %v1128, %v1128
          %1145 = vst [vmem:[%s394] sm:$0xf] %v1129
          %1146 = vst [vmem:[%s394 + $0x4] sm:$0xf] %v1130
          %1147 = vst [vmem:[%s394 + $0x8] sm:$0xf] %v1131
          %1148 = vst [vmem:[%s394 + $0xc] sm:$0xf] %v1132
          %1149 = vst [vmem:[%s394 + $0x10] sm:$0xf] %v1133
          %1150 = vst [vmem:[%s394 + $0x14] sm:$0xf] %v1134
          %1151 = vst [vmem:[%s394 + $0x18] sm:$0xf] %v1135
          %1152 = vst [vmem:[%s394 + $0x1c] sm:$0xf] %v1136
          %1153 = vst [vmem:[%s394 + $0x20] sm:$0xf] %v1137
          %1154 = vst [vmem:[%s394 + $0x24] sm:$0xf] %v1138
          %1155 = vst [vmem:[%s394 + $0x28] sm:$0xf] %v1139
          %1156 = vst [vmem:[%s394 + $0x2c] sm:$0xf] %v1140
          %1157 = vst [vmem:[%s394 + $0x30] sm:$0xf] %v1141
          %1158 = vst [vmem:[%s394 + $0x34] sm:$0xf] %v1142
          %1159 = vst [vmem:[%s394 + $0x38] sm:$0xf] %v1143
          %1160 = vst [vmem:[%s394 + $0x3c] sm:$0xf] %v1144
        $region93: #{_lambda_.2} parent=80 // pred_fallthru
          _
        %s1161 = smul.u32 16, %s21
        %p1162 = scmp.lt.s32.totalorder %s1161, 31
        %s1163 = scalar_select %p1162, %s1161, 31
        %s1164 = smul.addr %s1163, 4
        %s1165 = scalar_lea.vmem %s6, %s1164
        // Predicated region
        $region94: #{_lambda_.2} parent=80 // pred_check
          %p1166 = pneg %p185
        $region95: #{_lambda_.2} parent=80 // pred_check_branch
          %1168 = sbr.rel (%p1166) target = $region97
        $region96: #{_lambda_.2} parent=80 // pred_region
          %s1169 = smul.u32 16, %s21
        $region97: #{_lambda_.2} parent=80 // pred_fallthru
          _
      $region81: #{_lambda_.2} parent=5 // pred_fallthru
        _
      %p1170 = scmp.le.s32.totalorder 2, %s12
      // Predicated region
      $region98: #{_lambda_.2} parent=5 // pred_check
        %p1171 = pneg %p1170
      $region99: #{_lambda_.2} parent=5 // pred_check_branch
        %1173 = sbr.rel (%p1171) target = $region101
      $region100: #{_lambda_.2} parent=5 // pred_region
        %s1174 = ssub.s32 %s12, 2
        // Predicated region
        $region102: #{_lambda_.2} parent=100 // pred_check
          %p1175 = pneg %p191
        $region103: #{_lambda_.2} parent=100 // pred_check_branch
          %1177 = sbr.rel (%p1175) target = $region105
        $region104: #{_lambda_.2} parent=100 // pred_region
          %s1178 = smul.u32 16, %s23
          %p1179 = scmp.lt.s32.totalorder %s1178, 31
          %s1180 = scalar_select %p1179, %s1178, 31
          %s1181 = smul.addr %s1180, 4
          %s1182 = scalar_lea.vmem %s6, %s1181
        $region105: #{_lambda_.2} parent=100 // pred_fallthru
          _
      $region101: #{_lambda_.2} parent=5 // pred_fallthru
        _
    $region6: #{_lambda_.2} parent=1 // loop_footer
      %s16 = sadd.s32 1, %s12
    $region7: #{_lambda_.2} parent=1 // loop_footer_branch
      %11 = sbr.rel target = $region3
    $region8: #{_lambda_.2} parent=1 // loop_exit
      _

</llo_original>
